<compile_context>
chip_gen: v7x
topology: tpu7x:2x2x1
jax: 0.10.0
libtpu: 0.0.40
codegen_flags: <defaults>
</compile_context>

<pallas_src>
import jax
import jax.numpy as jnp
from jax.experimental import pallas as pl
from jax.experimental.pallas import tpu as pltpu


# ---------------------------------------------------------------------------
# Banded weights: a 3x3 VALID conv on a row-flattened image (H, W_in*Cin)
# becomes 3 plain matmuls (one per kernel row kh) against B[kh] of shape
# (W_in*Cin, W_out*Cout), with B[kh][w*Cin+ci, q*Cout+co] = W[kh, w-q, ci, co]
# for 0 <= w-q < 3 and 0 otherwise.
# ---------------------------------------------------------------------------
def _band_weights(w_hwio, w_in):
    kh_, kw_, cin, cout = w_hwio.shape
    w_out = w_in - kw_ + 1
    q = jnp.arange(w_out)[None, :]                       # (1, w_out)
    w = jnp.arange(w_in)[:, None]                        # (w_in, 1)
    kw = w - q                                           # (w_in, w_out)
    valid = (kw >= 0) & (kw < kw_)
    g = w_hwio[:, jnp.clip(kw, 0, kw_ - 1), :, :]        # (3, w_in, w_out, Cin, Cout)
    g = jnp.where(valid[None, :, :, None, None], g, 0.0)
    g = jnp.transpose(g, (0, 1, 3, 2, 4))                # (3, w_in, Cin, w_out, Cout)
    return g.reshape(kh_, w_in * cin, w_out * cout)


def _pick_out_row_tile(ho2, cap=64):
    """Largest multiple-of-8 divisor of ho2 that is <= cap, else one tile."""
    best = 0
    for cand in range(8, min(ho2, cap) + 1, 8):
        if ho2 % cand == 0:
            best = cand
    return best if best > 0 else ho2


# ---------------------------------------------------------------------------
# Parameter prep (hoisted out of the jitted forward; call once per (H, W)).
# ---------------------------------------------------------------------------
def prepare_params(params, height, width):
    up_w = params["up_w"].astype(jnp.float32)            # (Cin, Cu, 2, 2) torch layout
    up_b = params["up_b"].astype(jnp.float32)            # (Cu,)
    c1_w = params["c1_w"].astype(jnp.float32)            # (3, 3, Cd+Cu, C1) HWIO
    c1_b = params["c1_b"].astype(jnp.float32)
    c2_w = params["c2_w"].astype(jnp.float32)            # (3, 3, C1, C2) HWIO
    c2_b = params["c2_b"].astype(jnp.float32)

    cin, cu = up_w.shape[0], up_w.shape[1]
    cd = c1_w.shape[2] - cu
    c1 = c1_w.shape[3]
    c2 = c2_w.shape[3]
    h, w = height, width
    hf, wf = 2 * h, 2 * w
    wo1, wo2 = wf - 2, wf - 4
    ho2 = hf - 4
    tho = _pick_out_row_tile(ho2)
    rows_cat, rows_x = tho + 4, tho // 2 + 2

    # Banded ConvTranspose weights:
    #   B[ki][j*Cin+ci, (2j+kj)*Cu+co] = up_w[ci, co, ki, kj]
    eye = jnp.eye(w, dtype=jnp.float32)
    bup = jnp.einsum("jJ,iopk->pjiJko", eye, up_w).reshape(2, w * cin, wf * cu)

    # 0/1 row-scatter matrices: up_local[u] = S0[u] @ y0 + S1[u] @ y1
    # with y_p[s] = x_local[s] @ B[p]   (u parity selects p, u//2 selects s).
    u = jnp.arange(rows_cat)
    cols = jnp.arange(rows_x)
    hit = (u[:, None] // 2) == cols[None, :]
    s0 = jnp.where(hit & (u[:, None] % 2 == 0), 1.0, 0.0).astype(jnp.float32)
    s1 = jnp.where(hit & (u[:, None] % 2 == 1), 1.0, 0.0).astype(jnp.float32)

    # Split banded conv1 weights (down-channel part / up-channel part).
    w1d = _band_weights(c1_w[:, :, :cd, :], wf)          # (3, Wf*Cd, Wo1*C1)
    w1u = _band_weights(c1_w[:, :, cd:, :], wf)          # (3, Wf*Cu, Wo1*C1)
    w2 = _band_weights(c2_w, wo1)                        # (3, Wo1*C1, Wo2*C2)

    return {
        "wu0": bup[0], "wu1": bup[1],
        "bu": jnp.tile(up_b, wf).reshape(1, wf * cu),
        "s0": s0, "s1": s1,
        "w1d": w1d, "w1u": w1u,
        "b1": jnp.tile(c1_b, wo1).reshape(1, wo1 * c1),
        "w2": w2,
        "b2": jnp.tile(c2_b, wo2).reshape(1, wo2 * c2),
    }


# ---------------------------------------------------------------------------
# Fused kernel: upsample + crop + concat + conv1 + ReLU + conv2 + ReLU.
# ---------------------------------------------------------------------------
def _fused_upblock_kernel(x_ref, dn_ref, s0_ref, s1_ref, wu0_ref, wu1_ref,
                          bu_ref, w1d_ref, w1u_ref, b1_ref, w2_ref, b2_ref,
                          o_ref):
    # x_ref:  (1, H,  W*Cin)       whole image (per n)
    # dn_ref: (1, Hf, Wf*Cd)       whole cropped skip image (per n)
    # s0/s1:  (THo+4, THo//2+2)    0/1 row-scatter (even / odd up rows)
    # wu0/1:  (W*Cin, Wf*Cu)       banded ConvTranspose weights, ki = 0 / 1
    # bu:     (1, Wf*Cu)           ConvTranspose bias tiled over width
    # w1d/u:  (3, Wf*Cd|Cu, Wo1*C1) banded conv1 weights (split down / up)
    # w2:     (3, Wo1*C1, Wo2*C2)  banded conv2 weights
    # o_ref:  (1, THo, Wo2*C2)     output row tile
    tho = o_ref.shape[1]
    ho1 = tho + 2                   # conv1 rows needed by this tile
    rows_cat = tho + 4              # down / up rows needed by this tile
    rows_x = tho // 2 + 2           # x rows needed by this tile
    t = pl.program_id(1)

    r0 = t * tho                    # first down / up row of this tile
    q0 = t * (tho // 2)             # first x row of this tile
    if tho % 8 == 0:
        r0 = pl.multiple_of(r0, 8)
    if (tho // 2) % 8 == 0:
        q0 = pl.multiple_of(q0, 8)

    xr = x_ref[0, pl.ds(q0, rows_x), :]          # (rows_x, W*Cin)
    dn = dn_ref[0, pl.ds(r0, rows_cat), :]       # (rows_cat, Wf*Cd)

    # --- fused ConvTranspose2d(k=2, s=2): up rows [r0, r0 + rows_cat) -------
    y0 = jnp.dot(xr, wu0_ref[...], preferred_element_type=jnp.float32)
    y1 = jnp.dot(xr, wu1_ref[...], preferred_element_type=jnp.float32)
    up = (jnp.dot(s0_ref[...], y0, preferred_element_type=jnp.float32)
          + jnp.dot(s1_ref[...], y1, preferred_element_type=jnp.float32)
          + bu_ref[...])                          # (rows_cat, Wf*Cu)

    # --- conv1 (3x3 VALID) + ReLU: split-weight concat identity --------------
    # TODO(synk): the kh row slices below are sublane-misaligned (offsets 1,2);
    # check the Mosaic dump for relayout copies if this becomes the bottleneck.
    acc1 = jnp.zeros((ho1, b1_ref.shape[1]), jnp.float32)
    for kh in range(3):                           # static unrolled loop
        acc1 += jnp.dot(dn[kh:kh + ho1, :], w1d_ref[kh],
                        preferred_element_type=jnp.float32)
        acc1 += jnp.dot(up[kh:kh + ho1, :], w1u_ref[kh],
                        preferred_element_type=jnp.float32)
    a1 = jnp.maximum(acc1 + b1_ref[...], 0.0)     # (ho1, Wo1*C1)

    # --- conv2 (3x3 VALID) + ReLU --------------------------------------------
    acc2 = jnp.zeros((tho, b2_ref.shape[1]), jnp.float32)
    for kh in range(3):
        acc2 += jnp.dot(a1[kh:kh + tho, :], w2_ref[kh],
                        preferred_element_type=jnp.float32)
    o_ref[0] = jnp.maximum(acc2 + b2_ref[...], 0.0)


# ---------------------------------------------------------------------------
# Full forward pass (public wrapper keeps PyTorch's NCHW convention).
# ---------------------------------------------------------------------------
def conv_block_upsample_forward(x_nchw, down_nchw, prep):
    x = jnp.transpose(x_nchw, (0, 2, 3, 1)).astype(jnp.float32)      # NHWC
    down = jnp.transpose(down_nchw, (0, 2, 3, 1)).astype(jnp.float32)
    N, H, W, Cin = x.shape
    Cd = down.shape[-1]
    Hf, Wf = 2 * H, 2 * W
    Ho1, Wo1 = Hf - 2, Wf - 2
    Ho2, Wo2 = Ho1 - 2, Wo1 - 2
    Cu = prep["wu0"].shape[1] // Wf
    C1 = prep["b1"].shape[1] // Wo1
    C2 = prep["b2"].shape[1] // Wo2

    tho = _pick_out_row_tile(Ho2)
    T = Ho2 // tho
    rows_cat, rows_x = tho + 4, tho // 2 + 2
    assert prep["s0"].shape == (rows_cat, rows_x), "prep built for other spatial size"

    # Lane-dense 2-D layouts (free contiguous reshapes from NHWC).
    x2d = x.reshape(N, H, W * Cin)
    # Center crop: torch computes the offset from H and applies it to both
    # spatial dims; explicit-size slice also handles crop == 0 cleanly.
    crop = (down.shape[1] - Hf) // 2
    down_c = jax.lax.slice(down, (0, crop, crop, 0),
                           (N, crop + Hf, crop + Wf, Cd))
    dn2d = down_c.reshape(N, Hf, Wf * Cd)

    # VMEM budget: double-buffered blocks + constant weights + temporaries.
    fp = 4
    per_step = (H * W * Cin + Hf * Wf * Cd + tho * Wo2 * C2) * fp
    wkeys = ("s0", "s1", "wu0", "wu1", "bu", "w1d", "w1u", "b1", "w2", "b2")
    weight_bytes = sum(int(prep[k].size) for k in wkeys) * fp
    temp_bytes = (2 * rows_x * Wf * Cu + rows_cat * Wf * Cu
                  + 2 * (tho + 2) * Wo1 * C1 + 2 * tho * Wo2 * C2) * fp
    vmem_limit = int(min(max(2 * (per_step + weight_bytes) + temp_bytes + (4 << 20),
                             32 << 20), 64 << 20))

    out2d = pl.pallas_call(
        _fused_upblock_kernel,
        out_shape=jax.ShapeDtypeStruct((N, Ho2, Wo2 * C2), jnp.float32),
        grid=(N, T),
        in_specs=[
            pl.BlockSpec((1, H, W * Cin), lambda n, t: (n, 0, 0)),
            pl.BlockSpec((1, Hf, Wf * Cd), lambda n, t: (n, 0, 0)),
            pl.BlockSpec(prep["s0"].shape, lambda n, t: (0, 0)),
            pl.BlockSpec(prep["s1"].shape, lambda n, t: (0, 0)),
            pl.BlockSpec(prep["wu0"].shape, lambda n, t: (0, 0)),
            pl.BlockSpec(prep["wu1"].shape, lambda n, t: (0, 0)),
            pl.BlockSpec(prep["bu"].shape, lambda n, t: (0, 0)),
            pl.BlockSpec(prep["w1d"].shape, lambda n, t: (0, 0, 0)),
            pl.BlockSpec(prep["w1u"].shape, lambda n, t: (0, 0, 0)),
            pl.BlockSpec(prep["b1"].shape, lambda n, t: (0, 0)),
            pl.BlockSpec(prep["w2"].shape, lambda n, t: (0, 0, 0)),
            pl.BlockSpec(prep["b2"].shape, lambda n, t: (0, 0)),
        ],
        out_specs=pl.BlockSpec((1, tho, Wo2 * C2), lambda n, t: (n, t, 0)),
        compiler_params=pltpu.CompilerParams(
            dimension_semantics=("parallel", "parallel"),
            vmem_limit_bytes=vmem_limit),
    )(x2d, dn2d, prep["s0"], prep["s1"], prep["wu0"], prep["wu1"], prep["bu"],
      prep["w1d"], prep["w1u"], prep["b1"], prep["w2"], prep["b2"])

    out = out2d.reshape(N, Ho2, Wo2, C2)                 # free reshape
    return jnp.transpose(out, (0, 3, 1, 2))              # back to NCHW


# ---------------------------------------------------------------------------
# Pure-JAX reference (for in-script sanity check).
# ---------------------------------------------------------------------------
def _reference(x_nchw, down_nchw, params):
    x = jnp.transpose(x_nchw, (0, 2, 3, 1))
    N, H, W, Cin = x.shape
    t = jnp.einsum("nhwi,iokl->nhwklo", x, params["up_w"])    # (N,H,W,ki,kj,Cout)
    up = jnp.transpose(t, (0, 1, 3, 2, 4, 5)).reshape(N, 2 * H, 2 * W, -1)
    up = up + params["up_b"]

    down = jnp.transpose(down_nchw, (0, 2, 3, 1))
    crop = (down.shape[1] - up.shape[1]) // 2
    down_c = jax.lax.slice(
        down, (0, crop, crop, 0),
        (N, crop + up.shape[1], crop + up.shape[2], down.shape[3]))
    cat = jnp.concatenate([down_c, up], axis=-1)

    dn = ("NHWC", "HWIO", "NHWC")
    a1 = jax.nn.relu(jax.lax.conv_general_dilated(
        cat, params["c1_w"], (1, 1), "VALID", dimension_numbers=dn) + params["c1_b"])
    a2 = jax.nn.relu(jax.lax.conv_general_dilated(
        a1, params["c2_w"], (1, 1), "VALID", dimension_numbers=dn) + params["c2_b"])
    return jnp.transpose(a2, (0, 3, 1, 2))


def _run_case(name, n, cin, cout, h, w, hd):
    key = jax.random.PRNGKey(0)
    ks = jax.random.split(key, 8)
    x = jax.random.normal(ks[0], (n, cin, h, w), jnp.float32)             # NCHW
    down = jax.random.normal(ks[1], (n, cout, hd, hd), jnp.float32)
    params = {
        # ConvTranspose2d(Cin, Cout, 2, 2): torch weight (Cin, Cout, 2, 2)
        "up_w": 0.1 * jax.random.normal(ks[2], (cin, cout, 2, 2), jnp.float32),
        "up_b": 0.1 * jax.random.normal(ks[3], (cout,), jnp.float32),
        # Conv2d(Cin, Cout, 3): stored as HWIO (3, 3, Cin, Cout)
        "c1_w": 0.1 * jax.random.normal(ks[4], (3, 3, cin, cout), jnp.float32),
        "c1_b": 0.1 * jax.random.normal(ks[5], (cout,), jnp.float32),
        "c2_w": 0.1 * jax.random.normal(ks[6], (3, 3, cout, cout), jnp.float32),
        "c2_b": 0.1 * jax.random.normal(ks[7], (cout,), jnp.float32),
    }
    prep = prepare_params(params, h, w)          # hoisted: runs once, outside jit
    fwd = jax.jit(conv_block_upsample_forward)
    out = jax.block_until_ready(fwd(x, down, prep))
    ref = jax.block_until_ready(_reference(x, down, params))

    assert out.shape == (n, cout, 2 * h - 4, 2 * w - 4), (name, out.shape)
    err = float(jnp.max(jnp.abs(out - ref)))
    assert jnp.allclose(out, ref, rtol=1e-4, atol=1e-4), (name, err)


if __name__ == "__main__":
    # UNet-style up-block: in_channels=8, out_channels=4.
    _run_case("single_tile", n=2, cin=8, cout=4, h=8, w=8, hd=20)    # T = 1
    _run_case("row_tiled",   n=2, cin=8, cout=4, h=42, w=42, hd=92)  # T = 2
    print("KERNEL_OK")
</pallas_src>

<mosaic_0001>
module attributes {stable_mosaic.version = 11 : i64} {
  func.func @_fused_upblock_kernel(%arg0: i32, %arg1: i32, %arg2: memref<1x8x64xf32, #tpu.memory_space<vmem>>, %arg3: memref<1x16x64xf32, #tpu.memory_space<vmem>>, %arg4: memref<16x8xf32, #tpu.memory_space<vmem>>, %arg5: memref<16x8xf32, #tpu.memory_space<vmem>>, %arg6: memref<64x64xf32, #tpu.memory_space<vmem>>, %arg7: memref<64x64xf32, #tpu.memory_space<vmem>>, %arg8: memref<1x64xf32, #tpu.memory_space<vmem>>, %arg9: memref<3x64x56xf32, #tpu.memory_space<vmem>>, %arg10: memref<3x64x56xf32, #tpu.memory_space<vmem>>, %arg11: memref<1x56xf32, #tpu.memory_space<vmem>>, %arg12: memref<3x56x48xf32, #tpu.memory_space<vmem>>, %arg13: memref<1x48xf32, #tpu.memory_space<vmem>>, %arg14: memref<1x12x48xf32, #tpu.memory_space<vmem>>) attributes {dimension_semantics = [#tpu.dimension_semantics<parallel>, #tpu.dimension_semantics<parallel>], iteration_bounds = array<i64: 2, 1>, scalar_prefetch = 0 : i64, scratch_operands = 0 : i64, tpu.core_type = #tpu.core_type<tc>, window_params = [{transform_indices = @transform_0, window_bounds = array<i64: 1, 8, 64>}, {transform_indices = @transform_1, window_bounds = array<i64: 1, 16, 64>}, {pipeline_mode = #tpu.pipeline_mode<synchronous>, transform_indices = @transform_2, window_bounds = array<i64: 16, 8>}, {pipeline_mode = #tpu.pipeline_mode<synchronous>, transform_indices = @transform_3, window_bounds = array<i64: 16, 8>}, {pipeline_mode = #tpu.pipeline_mode<synchronous>, transform_indices = @transform_4, window_bounds = array<i64: 64, 64>}, {pipeline_mode = #tpu.pipeline_mode<synchronous>, transform_indices = @transform_5, window_bounds = array<i64: 64, 64>}, {pipeline_mode = #tpu.pipeline_mode<synchronous>, transform_indices = @transform_6, window_bounds = array<i64: 1, 64>}, {pipeline_mode = #tpu.pipeline_mode<synchronous>, transform_indices = @transform_7, window_bounds = array<i64: 3, 64, 56>}, {pipeline_mode = #tpu.pipeline_mode<synchronous>, transform_indices = @transform_8, window_bounds = array<i64: 3, 64, 56>}, {pipeline_mode = #tpu.pipeline_mode<synchronous>, transform_indices = @transform_9, window_bounds = array<i64: 1, 56>}, {pipeline_mode = #tpu.pipeline_mode<synchronous>, transform_indices = @transform_10, window_bounds = array<i64: 3, 56, 48>}, {pipeline_mode = #tpu.pipeline_mode<synchronous>, transform_indices = @transform_11, window_bounds = array<i64: 1, 48>}, {transform_indices = @transform_12, window_bounds = array<i64: 1, 12, 48>}]} {
    %c12_i32 = arith.constant 12 : i32
    %0 = arith.muli %arg1, %c12_i32 : i32
    %c6_i32 = arith.constant 6 : i32
    %1 = arith.muli %arg1, %c6_i32 : i32
    %c0 = arith.constant 0 : index
    %2 = arith.index_cast %1 : i32 to index
    %c0_0 = arith.constant 0 : index
    %3 = vector.load %arg2[%c0, %2, %c0_0] : memref<1x8x64xf32, #tpu.memory_space<vmem>>, vector<1x8x64xf32>
    %4 = vector.shape_cast %3 : vector<1x8x64xf32> to vector<8x64xf32>
    %c0_1 = arith.constant 0 : index
    %5 = arith.index_cast %0 : i32 to index
    %c0_2 = arith.constant 0 : index
    %6 = vector.load %arg3[%c0_1, %5, %c0_2] : memref<1x16x64xf32, #tpu.memory_space<vmem>>, vector<1x16x64xf32>
    %7 = vector.shape_cast %6 : vector<1x16x64xf32> to vector<16x64xf32>
    %c0_3 = arith.constant 0 : index
    %c0_4 = arith.constant 0 : index
    %8 = vector.load %arg6[%c0_3, %c0_4] : memref<64x64xf32, #tpu.memory_space<vmem>>, vector<64x64xf32>
    %cst = arith.constant dense<0.000000e+00> : vector<8x64xf32>
    %9 = tpu.matmul %4, %8, %cst {dimension_numbers = #tpu.dot_dimension_numbers<[1], [0], [0], [1], [0, 0, 1, 1], [], []>} : vector<8x64xf32>, vector<64x64xf32>, vector<8x64xf32> -> vector<8x64xf32>
    %c0_5 = arith.constant 0 : index
    %c0_6 = arith.constant 0 : index
    %10 = vector.load %arg7[%c0_5, %c0_6] : memref<64x64xf32, #tpu.memory_space<vmem>>, vector<64x64xf32>
    %cst_7 = arith.constant dense<0.000000e+00> : vector<8x64xf32>
    %11 = tpu.matmul %4, %10, %cst_7 {dimension_numbers = #tpu.dot_dimension_numbers<[1], [0], [0], [1], [0, 0, 1, 1], [], []>} : vector<8x64xf32>, vector<64x64xf32>, vector<8x64xf32> -> vector<8x64xf32>
    %c0_8 = arith.constant 0 : index
    %c0_9 = arith.constant 0 : index
    %12 = vector.load %arg4[%c0_8, %c0_9] : memref<16x8xf32, #tpu.memory_space<vmem>>, vector<16x8xf32>
    %cst_10 = arith.constant dense<0.000000e+00> : vector<16x64xf32>
    %13 = tpu.matmul %12, %9, %cst_10 {dimension_numbers = #tpu.dot_dimension_numbers<[1], [0], [0], [1], [0, 0, 1, 1], [], []>} : vector<16x8xf32>, vector<8x64xf32>, vector<16x64xf32> -> vector<16x64xf32>
    %c0_11 = arith.constant 0 : index
    %c0_12 = arith.constant 0 : index
    %14 = vector.load %arg5[%c0_11, %c0_12] : memref<16x8xf32, #tpu.memory_space<vmem>>, vector<16x8xf32>
    %cst_13 = arith.constant dense<0.000000e+00> : vector<16x64xf32>
    %15 = tpu.matmul %14, %11, %cst_13 {dimension_numbers = #tpu.dot_dimension_numbers<[1], [0], [0], [1], [0, 0, 1, 1], [], []>} : vector<16x8xf32>, vector<8x64xf32>, vector<16x64xf32> -> vector<16x64xf32>
    %16 = arith.addf %13, %15 : vector<16x64xf32>
    %c0_14 = arith.constant 0 : index
    %c0_15 = arith.constant 0 : index
    %17 = vector.load %arg8[%c0_14, %c0_15] : memref<1x64xf32, #tpu.memory_space<vmem>>, vector<1x64xf32>
    %18 = vector.broadcast %17 : vector<1x64xf32> to vector<16x64xf32>
    %19 = arith.addf %16, %18 : vector<16x64xf32>
    %cst_16 = arith.constant 0.000000e+00 : f32
    %20 = vector.broadcast %cst_16 : f32 to vector<14x56xf32>
    %21 = vector.extract_strided_slice %7 {offsets = [0, 0], sizes = [14, 64], strides = [1, 1]} : vector<16x64xf32> to vector<14x64xf32>
    %c0_17 = arith.constant 0 : index
    %c0_18 = arith.constant 0 : index
    %c0_19 = arith.constant 0 : index
    %22 = vector.load %arg9[%c0_17, %c0_18, %c0_19] : memref<3x64x56xf32, #tpu.memory_space<vmem>>, vector<1x64x56xf32>
    %23 = vector.shape_cast %22 : vector<1x64x56xf32> to vector<64x56xf32>
    %cst_20 = arith.constant dense<0.000000e+00> : vector<14x56xf32>
    %24 = tpu.matmul %21, %23, %cst_20 {dimension_numbers = #tpu.dot_dimension_numbers<[1], [0], [0], [1], [0, 0, 1, 1], [], []>} : vector<14x64xf32>, vector<64x56xf32>, vector<14x56xf32> -> vector<14x56xf32>
    %25 = arith.addf %20, %24 : vector<14x56xf32>
    %26 = vector.extract_strided_slice %19 {offsets = [0, 0], sizes = [14, 64], strides = [1, 1]} : vector<16x64xf32> to vector<14x64xf32>
    %c0_21 = arith.constant 0 : index
    %c0_22 = arith.constant 0 : index
    %c0_23 = arith.constant 0 : index
    %27 = vector.load %arg10[%c0_21, %c0_22, %c0_23] : memref<3x64x56xf32, #tpu.memory_space<vmem>>, vector<1x64x56xf32>
    %28 = vector.shape_cast %27 : vector<1x64x56xf32> to vector<64x56xf32>
    %cst_24 = arith.constant dense<0.000000e+00> : vector<14x56xf32>
    %29 = tpu.matmul %26, %28, %cst_24 {dimension_numbers = #tpu.dot_dimension_numbers<[1], [0], [0], [1], [0, 0, 1, 1], [], []>} : vector<14x64xf32>, vector<64x56xf32>, vector<14x56xf32> -> vector<14x56xf32>
    %30 = arith.addf %25, %29 : vector<14x56xf32>
    %31 = vector.extract_strided_slice %7 {offsets = [1, 0], sizes = [14, 64], strides = [1, 1]} : vector<16x64xf32> to vector<14x64xf32>
    %c1 = arith.constant 1 : index
    %c0_25 = arith.constant 0 : index
    %c0_26 = arith.constant 0 : index
    %32 = vector.load %arg9[%c1, %c0_25, %c0_26] : memref<3x64x56xf32, #tpu.memory_space<vmem>>, vector<1x64x56xf32>
    %33 = vector.shape_cast %32 : vector<1x64x56xf32> to vector<64x56xf32>
    %cst_27 = arith.constant dense<0.000000e+00> : vector<14x56xf32>
    %34 = tpu.matmul %31, %33, %cst_27 {dimension_numbers = #tpu.dot_dimension_numbers<[1], [0], [0], [1], [0, 0, 1, 1], [], []>} : vector<14x64xf32>, vector<64x56xf32>, vector<14x56xf32> -> vector<14x56xf32>
    %35 = arith.addf %30, %34 : vector<14x56xf32>
    %36 = vector.extract_strided_slice %19 {offsets = [1, 0], sizes = [14, 64], strides = [1, 1]} : vector<16x64xf32> to vector<14x64xf32>
    %c1_28 = arith.constant 1 : index
    %c0_29 = arith.constant 0 : index
    %c0_30 = arith.constant 0 : index
    %37 = vector.load %arg10[%c1_28, %c0_29, %c0_30] : memref<3x64x56xf32, #tpu.memory_space<vmem>>, vector<1x64x56xf32>
    %38 = vector.shape_cast %37 : vector<1x64x56xf32> to vector<64x56xf32>
    %cst_31 = arith.constant dense<0.000000e+00> : vector<14x56xf32>
    %39 = tpu.matmul %36, %38, %cst_31 {dimension_numbers = #tpu.dot_dimension_numbers<[1], [0], [0], [1], [0, 0, 1, 1], [], []>} : vector<14x64xf32>, vector<64x56xf32>, vector<14x56xf32> -> vector<14x56xf32>
    %40 = arith.addf %35, %39 : vector<14x56xf32>
    %41 = vector.extract_strided_slice %7 {offsets = [2, 0], sizes = [14, 64], strides = [1, 1]} : vector<16x64xf32> to vector<14x64xf32>
    %c2 = arith.constant 2 : index
    %c0_32 = arith.constant 0 : index
    %c0_33 = arith.constant 0 : index
    %42 = vector.load %arg9[%c2, %c0_32, %c0_33] : memref<3x64x56xf32, #tpu.memory_space<vmem>>, vector<1x64x56xf32>
    %43 = vector.shape_cast %42 : vector<1x64x56xf32> to vector<64x56xf32>
    %cst_34 = arith.constant dense<0.000000e+00> : vector<14x56xf32>
    %44 = tpu.matmul %41, %43, %cst_34 {dimension_numbers = #tpu.dot_dimension_numbers<[1], [0], [0], [1], [0, 0, 1, 1], [], []>} : vector<14x64xf32>, vector<64x56xf32>, vector<14x56xf32> -> vector<14x56xf32>
    %45 = arith.addf %40, %44 : vector<14x56xf32>
    %46 = vector.extract_strided_slice %19 {offsets = [2, 0], sizes = [14, 64], strides = [1, 1]} : vector<16x64xf32> to vector<14x64xf32>
    %c2_35 = arith.constant 2 : index
    %c0_36 = arith.constant 0 : index
    %c0_37 = arith.constant 0 : index
    %47 = vector.load %arg10[%c2_35, %c0_36, %c0_37] : memref<3x64x56xf32, #tpu.memory_space<vmem>>, vector<1x64x56xf32>
    %48 = vector.shape_cast %47 : vector<1x64x56xf32> to vector<64x56xf32>
    %cst_38 = arith.constant dense<0.000000e+00> : vector<14x56xf32>
    %49 = tpu.matmul %46, %48, %cst_38 {dimension_numbers = #tpu.dot_dimension_numbers<[1], [0], [0], [1], [0, 0, 1, 1], [], []>} : vector<14x64xf32>, vector<64x56xf32>, vector<14x56xf32> -> vector<14x56xf32>
    %50 = arith.addf %45, %49 : vector<14x56xf32>
    %c0_39 = arith.constant 0 : index
    %c0_40 = arith.constant 0 : index
    %51 = vector.load %arg11[%c0_39, %c0_40] : memref<1x56xf32, #tpu.memory_space<vmem>>, vector<1x56xf32>
    %52 = vector.broadcast %51 : vector<1x56xf32> to vector<14x56xf32>
    %53 = arith.addf %50, %52 : vector<14x56xf32>
    %cst_41 = arith.constant 0.000000e+00 : f32
    %54 = vector.broadcast %cst_41 : f32 to vector<14x56xf32>
    %55 = arith.maximumf %53, %54 : vector<14x56xf32>
    %cst_42 = arith.constant 0.000000e+00 : f32
    %56 = vector.broadcast %cst_42 : f32 to vector<12x48xf32>
    %57 = vector.extract_strided_slice %55 {offsets = [0, 0], sizes = [12, 56], strides = [1, 1]} : vector<14x56xf32> to vector<12x56xf32>
    %c0_43 = arith.constant 0 : index
    %c0_44 = arith.constant 0 : index
    %c0_45 = arith.constant 0 : index
    %58 = vector.load %arg12[%c0_43, %c0_44, %c0_45] : memref<3x56x48xf32, #tpu.memory_space<vmem>>, vector<1x56x48xf32>
    %59 = vector.shape_cast %58 : vector<1x56x48xf32> to vector<56x48xf32>
    %cst_46 = arith.constant dense<0.000000e+00> : vector<12x48xf32>
    %60 = tpu.matmul %57, %59, %cst_46 {dimension_numbers = #tpu.dot_dimension_numbers<[1], [0], [0], [1], [0, 0, 1, 1], [], []>} : vector<12x56xf32>, vector<56x48xf32>, vector<12x48xf32> -> vector<12x48xf32>
    %61 = arith.addf %56, %60 : vector<12x48xf32>
    %62 = vector.extract_strided_slice %55 {offsets = [1, 0], sizes = [12, 56], strides = [1, 1]} : vector<14x56xf32> to vector<12x56xf32>
    %c1_47 = arith.constant 1 : index
    %c0_48 = arith.constant 0 : index
    %c0_49 = arith.constant 0 : index
    %63 = vector.load %arg12[%c1_47, %c0_48, %c0_49] : memref<3x56x48xf32, #tpu.memory_space<vmem>>, vector<1x56x48xf32>
    %64 = vector.shape_cast %63 : vector<1x56x48xf32> to vector<56x48xf32>
    %cst_50 = arith.constant dense<0.000000e+00> : vector<12x48xf32>
    %65 = tpu.matmul %62, %64, %cst_50 {dimension_numbers = #tpu.dot_dimension_numbers<[1], [0], [0], [1], [0, 0, 1, 1], [], []>} : vector<12x56xf32>, vector<56x48xf32>, vector<12x48xf32> -> vector<12x48xf32>
    %66 = arith.addf %61, %65 : vector<12x48xf32>
    %67 = vector.extract_strided_slice %55 {offsets = [2, 0], sizes = [12, 56], strides = [1, 1]} : vector<14x56xf32> to vector<12x56xf32>
    %c2_51 = arith.constant 2 : index
    %c0_52 = arith.constant 0 : index
    %c0_53 = arith.constant 0 : index
    %68 = vector.load %arg12[%c2_51, %c0_52, %c0_53] : memref<3x56x48xf32, #tpu.memory_space<vmem>>, vector<1x56x48xf32>
    %69 = vector.shape_cast %68 : vector<1x56x48xf32> to vector<56x48xf32>
    %cst_54 = arith.constant dense<0.000000e+00> : vector<12x48xf32>
    %70 = tpu.matmul %67, %69, %cst_54 {dimension_numbers = #tpu.dot_dimension_numbers<[1], [0], [0], [1], [0, 0, 1, 1], [], []>} : vector<12x56xf32>, vector<56x48xf32>, vector<12x48xf32> -> vector<12x48xf32>
    %71 = arith.addf %66, %70 : vector<12x48xf32>
    %c0_55 = arith.constant 0 : index
    %c0_56 = arith.constant 0 : index
    %72 = vector.load %arg13[%c0_55, %c0_56] : memref<1x48xf32, #tpu.memory_space<vmem>>, vector<1x48xf32>
    %73 = vector.broadcast %72 : vector<1x48xf32> to vector<12x48xf32>
    %74 = arith.addf %71, %73 : vector<12x48xf32>
    %cst_57 = arith.constant 0.000000e+00 : f32
    %75 = vector.broadcast %cst_57 : f32 to vector<12x48xf32>
    %76 = arith.maximumf %74, %75 : vector<12x48xf32>
    %c0_58 = arith.constant 0 : index
    %c0_59 = arith.constant 0 : index
    %c0_60 = arith.constant 0 : index
    %77 = vector.load %arg14[%c0_58, %c0_59, %c0_60] : memref<1x12x48xf32, #tpu.memory_space<vmem>>, vector<1x12x48xf32>
    %78 = vector.shape_cast %77 : vector<1x12x48xf32> to vector<12x48xf32>
    %79 = vector.shape_cast %76 : vector<12x48xf32> to vector<1x12x48xf32>
    tpu.vector_store %arg14[%c0_58, %c0_59, %c0_60], %79 {strides = array<i32>} : memref<1x12x48xf32, #tpu.memory_space<vmem>>, vector<1x12x48xf32>,
    return
  }
  func.func @transform_0(%arg0: i32, %arg1: i32) -> (i32, i32, i32) {
    %c0_i32 = arith.constant 0 : i32
    %c0_i32_0 = arith.constant 0 : i32
    %c0_i32_1 = arith.constant 0 : i32
    return %arg0, %c0_i32, %c0_i32_0 : i32, i32, i32
  }
  func.func @transform_1(%arg0: i32, %arg1: i32) -> (i32, i32, i32) {
    %c0_i32 = arith.constant 0 : i32
    %c0_i32_0 = arith.constant 0 : i32
    %c0_i32_1 = arith.constant 0 : i32
    return %arg0, %c0_i32, %c0_i32_0 : i32, i32, i32
  }
  func.func @transform_2(%arg0: i32, %arg1: i32) -> (i32, i32) {
    %c0_i32 = arith.constant 0 : i32
    %c0_i32_0 = arith.constant 0 : i32
    %c0_i32_1 = arith.constant 0 : i32
    return %c0_i32, %c0_i32_0 : i32, i32
  }
  func.func @transform_3(%arg0: i32, %arg1: i32) -> (i32, i32) {
    %c0_i32 = arith.constant 0 : i32
    %c0_i32_0 = arith.constant 0 : i32
    %c0_i32_1 = arith.constant 0 : i32
    return %c0_i32, %c0_i32_0 : i32, i32
  }
  func.func @transform_4(%arg0: i32, %arg1: i32) -> (i32, i32) {
    %c0_i32 = arith.constant 0 : i32
    %c0_i32_0 = arith.constant 0 : i32
    %c0_i32_1 = arith.constant 0 : i32
    return %c0_i32, %c0_i32_0 : i32, i32
  }
  func.func @transform_5(%arg0: i32, %arg1: i32) -> (i32, i32) {
    %c0_i32 = arith.constant 0 : i32
    %c0_i32_0 = arith.constant 0 : i32
    %c0_i32_1 = arith.constant 0 : i32
    return %c0_i32, %c0_i32_0 : i32, i32
  }
  func.func @transform_6(%arg0: i32, %arg1: i32) -> (i32, i32) {
    %c0_i32 = arith.constant 0 : i32
    %c0_i32_0 = arith.constant 0 : i32
    %c0_i32_1 = arith.constant 0 : i32
    return %c0_i32, %c0_i32_0 : i32, i32
  }
  func.func @transform_7(%arg0: i32, %arg1: i32) -> (i32, i32, i32) {
    %c0_i32 = arith.constant 0 : i32
    %c0_i32_0 = arith.constant 0 : i32
    %c0_i32_1 = arith.constant 0 : i32
    %c0_i32_2 = arith.constant 0 : i32
    return %c0_i32, %c0_i32_0, %c0_i32_1 : i32, i32, i32
  }
  func.func @transform_8(%arg0: i32, %arg1: i32) -> (i32, i32, i32) {
    %c0_i32 = arith.constant 0 : i32
    %c0_i32_0 = arith.constant 0 : i32
    %c0_i32_1 = arith.constant 0 : i32
    %c0_i32_2 = arith.constant 0 : i32
    return %c0_i32, %c0_i32_0, %c0_i32_1 : i32, i32, i32
  }
  func.func @transform_9(%arg0: i32, %arg1: i32) -> (i32, i32) {
    %c0_i32 = arith.constant 0 : i32
    %c0_i32_0 = arith.constant 0 : i32
    %c0_i32_1 = arith.constant 0 : i32
    return %c0_i32, %c0_i32_0 : i32, i32
  }
  func.func @transform_10(%arg0: i32, %arg1: i32) -> (i32, i32, i32) {
    %c0_i32 = arith.constant 0 : i32
    %c0_i32_0 = arith.constant 0 : i32
    %c0_i32_1 = arith.constant 0 : i32
    %c0_i32_2 = arith.constant 0 : i32
    return %c0_i32, %c0_i32_0, %c0_i32_1 : i32, i32, i32
  }
  func.func @transform_11(%arg0: i32, %arg1: i32) -> (i32, i32) {
    %c0_i32 = arith.constant 0 : i32
    %c0_i32_0 = arith.constant 0 : i32
    %c0_i32_1 = arith.constant 0 : i32
    return %c0_i32, %c0_i32_0 : i32, i32
  }
  func.func @transform_12(%arg0: i32, %arg1: i32) -> (i32, i32, i32) {
    %c0_i32 = arith.constant 0 : i32
    %c0_i32_0 = arith.constant 0 : i32
    return %arg0, %arg1, %c0_i32 : i32, i32, i32
  }
}

</mosaic_0001>

<llo_original>
// kernel: conv_block_upsample_forward.1
$region0: #{conv_block_upsample_forward.1}
  #allocation0 [shape = 'u32[]', space=smem, size = 0x4, offset = 0x4, fixed_abs, tag = 'smem constant byte address 0x4 - core index']
  #allocation1 [shape = 'u32[144,128]{1,0:T(1,128)}', space=vmem, size = 0x12000, scoped, tag = 'internal scratch']
  %s0 = inlined_call_operand.vmem [shape: f32[2,8,64], index: 0, kind: input, shape index: {}]
  %s1 = inlined_call_operand.vmem [shape: f32[2,16,64], index: 1, kind: input, shape index: {}]
  %s2 = inlined_call_operand.vmem [shape: f32[16,8], index: 2, kind: input, shape index: {}]
  %s3 = inlined_call_operand.vmem [shape: f32[16,8], index: 3, kind: input, shape index: {}]
  %s4 = inlined_call_operand.vmem [shape: f32[64,64], index: 4, kind: input, shape index: {}]
  %s5 = inlined_call_operand.vmem [shape: f32[64,64], index: 5, kind: input, shape index: {}]
  %s6 = inlined_call_operand.vmem [shape: f32[1,64], index: 6, kind: input, shape index: {}]
  %s7 = inlined_call_operand.vmem [shape: f32[3,64,56], index: 7, kind: input, shape index: {}]
  %s8 = inlined_call_operand.vmem [shape: f32[3,64,56], index: 8, kind: input, shape index: {}]
  %s9 = inlined_call_operand.vmem [shape: f32[1,56], index: 9, kind: input, shape index: {}]
  %s10 = inlined_call_operand.vmem [shape: f32[3,56,48], index: 10, kind: input, shape index: {}]
  %s11 = inlined_call_operand.vmem [shape: f32[1,48], index: 11, kind: input, shape index: {}]
  %s12 = inlined_call_operand.vmem [shape: f32[2,12,48], index: 12, kind: output, shape index: {}]
  %s13 = sld [smem:[#allocation0]]
  $region81: #{conv_block_upsample_forward.1} parent=0
    _
  %s15 = ssub.s32 1, %s13
  %s16 = scalar_select 0, %s15, %s13
  loop: start=0, step=1, limit=4
  $region2: #{conv_block_upsample_forward.1} parent=0 // loop_pre_header
    _
  $region3: #{conv_block_upsample_forward.1} parent=0 // loop_header
    %s18 = sphi 0, %s22
    %p19 = scmp.ge.s32.totalorder %s18, 4
    %s25 = sphi 0, %s37
    %s26 = sphi 0, %s33
    %s27 = sphi 0, %s25
    %s28 = sphi 0, %s26
    %s29 = sphi 0, %s27
    %s30 = sphi 0, %s28
    %s40 = sphi 0, %s42
    %s43 = sphi 0, %s40
    %s44 = sphi 0, %s43
    %s60 = sphi 0, %s44
    %s66 = sphi 0, %s68
    %s69 = sphi 0, %s66
    %s70 = sphi 0, %s69
    %s86 = sphi 0, %s70
    %s90 = sphi 0, %s90
    %s92 = sphi 0, %s90
    %s93 = sphi 0, %s92
    %s107 = sphi 0, %s93
    %s111 = sphi 0, %s111
    %s113 = sphi 0, %s111
    %s114 = sphi 0, %s113
    %s128 = sphi 0, %s114
    %s132 = sphi 0, %s132
    %s134 = sphi 0, %s132
    %s135 = sphi 0, %s134
    %s149 = sphi 0, %s135
    %s153 = sphi 0, %s153
    %s155 = sphi 0, %s153
    %s156 = sphi 0, %s155
    %s170 = sphi 0, %s156
    %s174 = sphi 0, %s174
    %s176 = sphi 0, %s174
    %s177 = sphi 0, %s176
    %s191 = sphi 0, %s177
    %s195 = sphi 0, %s195
    %s197 = sphi 0, %s195
    %s198 = sphi 0, %s197
    %s212 = sphi 0, %s198
    %s216 = sphi 0, %s216
    %s218 = sphi 0, %s216
    %s219 = sphi 0, %s218
    %s233 = sphi 0, %s219
    %s237 = sphi 0, %s237
    %s239 = sphi 0, %s237
    %s240 = sphi 0, %s239
    %s254 = sphi 0, %s240
    %s258 = sphi 0, %s258
    %s260 = sphi 0, %s258
    %s261 = sphi 0, %s260
    %s275 = sphi 0, %s261
    %s279 = sphi 0, %s279
    %s281 = sphi 0, %s279
    %s282 = sphi 0, %s281
    %s296 = sphi 0, %s282
    %s304 = sphi 0, %s306
    %s307 = sphi 0, %s304
    %s308 = sphi 0, %s307
    %s324 = sphi 0, %s308
  $region4: #{conv_block_upsample_forward.1} parent=0 // loop_header_branch
    %21 = sbr.rel (%p19) target = $region8
  $region5: #{conv_block_upsample_forward.1} parent=0 // loop_body
    %s23 = ssub.s32 %s18, 1
    %s24 = ssub.s32 %s18, 2
    %s31 = sadd.s32 1, %s26
    %p32 = scmp.ge.s32.totalorder %s31, 1
    %s33 = scalar_select %p32, 0, %s31
    %s34 = sadd.s32 1, %s25
    %s35 = scalar_select %p32, %s34, %s25
    %p36 = scmp.ge.s32.totalorder %s35, 2
    %s37 = scalar_select %p36, 0, %s35
    %s38 = ssub.s32 %s25, %s37
    %p39 = scmp.eq.s32.totalorder %s38, 0
    %s41 = sadd.s32 %s40, 1
    %s42 = scalar_select %p39, %s40, %s41
    %p45 = pneg %p39
    %p46 = scmp.eq.s32.totalorder %s18, 1
    %p47 = por %p45, %p46
    %p48 = scmp.ne.s32.totalorder %s40, %s43
    %p49 = scmp.eq.s32.totalorder %s18, 0
    %p50 = por %p48, %p49
    %p51 = scmp.ne.s32.totalorder %s40, %s43
    %p52 = scmp.eq.s32.totalorder %s23, 1
    %p53 = por %p51, %p52
    %p54 = scmp.ne.s32.totalorder %s43, %s44
    %p55 = scmp.eq.s32.totalorder %s23, 0
    %p56 = por %p54, %p55
    %p57 = scmp.ne.s32.totalorder %s43, %s44
    %p58 = scmp.eq.s32.totalorder %s24, 1
    %p59 = por %p57, %p58
    %p61 = scmp.ne.s32.totalorder %s44, %s60
    %p62 = scmp.eq.s32.totalorder %s24, 0
    %p63 = por %p61, %p62
    %s64 = ssub.s32 %s25, %s37
    %p65 = scmp.eq.s32.totalorder %s64, 0
    %s67 = sadd.s32 %s66, 1
    %s68 = scalar_select %p65, %s66, %s67
    %p71 = pneg %p65
    %p72 = scmp.eq.s32.totalorder %s18, 1
    %p73 = por %p71, %p72
    %p74 = scmp.ne.s32.totalorder %s66, %s69
    %p75 = scmp.eq.s32.totalorder %s18, 0
    %p76 = por %p74, %p75
    %p77 = scmp.ne.s32.totalorder %s66, %s69
    %p78 = scmp.eq.s32.totalorder %s23, 1
    %p79 = por %p77, %p78
    %p80 = scmp.ne.s32.totalorder %s69, %s70
    %p81 = scmp.eq.s32.totalorder %s23, 0
    %p82 = por %p80, %p81
    %p83 = scmp.ne.s32.totalorder %s69, %s70
    %p84 = scmp.eq.s32.totalorder %s24, 1
    %p85 = por %p83, %p84
    %p87 = scmp.ne.s32.totalorder %s70, %s86
    %p88 = scmp.eq.s32.totalorder %s24, 0
    %p89 = por %p87, %p88
    %s91 = sadd.s32 %s90, 1
    %p94 = scmp.eq.s32.totalorder %s18, 1
    %p95 = scmp.ne.s32.totalorder %s90, %s92
    %p96 = scmp.eq.s32.totalorder %s18, 0
    %p97 = por %p95, %p96
    %p98 = scmp.ne.s32.totalorder %s90, %s92
    %p99 = scmp.eq.s32.totalorder %s23, 1
    %p100 = por %p98, %p99
    %p101 = scmp.ne.s32.totalorder %s92, %s93
    %p102 = scmp.eq.s32.totalorder %s23, 0
    %p103 = por %p101, %p102
    %p104 = scmp.ne.s32.totalorder %s92, %s93
    %p105 = scmp.eq.s32.totalorder %s24, 1
    %p106 = por %p104, %p105
    %p108 = scmp.ne.s32.totalorder %s93, %s107
    %p109 = scmp.eq.s32.totalorder %s24, 0
    %p110 = por %p108, %p109
    %s112 = sadd.s32 %s111, 1
    %p115 = scmp.eq.s32.totalorder %s18, 1
    %p116 = scmp.ne.s32.totalorder %s111, %s113
    %p117 = scmp.eq.s32.totalorder %s18, 0
    %p118 = por %p116, %p117
    %p119 = scmp.ne.s32.totalorder %s111, %s113
    %p120 = scmp.eq.s32.totalorder %s23, 1
    %p121 = por %p119, %p120
    %p122 = scmp.ne.s32.totalorder %s113, %s114
    %p123 = scmp.eq.s32.totalorder %s23, 0
    %p124 = por %p122, %p123
    %p125 = scmp.ne.s32.totalorder %s113, %s114
    %p126 = scmp.eq.s32.totalorder %s24, 1
    %p127 = por %p125, %p126
    %p129 = scmp.ne.s32.totalorder %s114, %s128
    %p130 = scmp.eq.s32.totalorder %s24, 0
    %p131 = por %p129, %p130
    %s133 = sadd.s32 %s132, 1
    %p136 = scmp.eq.s32.totalorder %s18, 1
    %p137 = scmp.ne.s32.totalorder %s132, %s134
    %p138 = scmp.eq.s32.totalorder %s18, 0
    %p139 = por %p137, %p138
    %p140 = scmp.ne.s32.totalorder %s132, %s134
    %p141 = scmp.eq.s32.totalorder %s23, 1
    %p142 = por %p140, %p141
    %p143 = scmp.ne.s32.totalorder %s134, %s135
    %p144 = scmp.eq.s32.totalorder %s23, 0
    %p145 = por %p143, %p144
    %p146 = scmp.ne.s32.totalorder %s134, %s135
    %p147 = scmp.eq.s32.totalorder %s24, 1
    %p148 = por %p146, %p147
    %p150 = scmp.ne.s32.totalorder %s135, %s149
    %p151 = scmp.eq.s32.totalorder %s24, 0
    %p152 = por %p150, %p151
    %s154 = sadd.s32 %s153, 1
    %p157 = scmp.eq.s32.totalorder %s18, 1
    %p158 = scmp.ne.s32.totalorder %s153, %s155
    %p159 = scmp.eq.s32.totalorder %s18, 0
    %p160 = por %p158, %p159
    %p161 = scmp.ne.s32.totalorder %s153, %s155
    %p162 = scmp.eq.s32.totalorder %s23, 1
    %p163 = por %p161, %p162
    %p164 = scmp.ne.s32.totalorder %s155, %s156
    %p165 = scmp.eq.s32.totalorder %s23, 0
    %p166 = por %p164, %p165
    %p167 = scmp.ne.s32.totalorder %s155, %s156
    %p168 = scmp.eq.s32.totalorder %s24, 1
    %p169 = por %p167, %p168
    %p171 = scmp.ne.s32.totalorder %s156, %s170
    %p172 = scmp.eq.s32.totalorder %s24, 0
    %p173 = por %p171, %p172
    %s175 = sadd.s32 %s174, 1
    %p178 = scmp.eq.s32.totalorder %s18, 1
    %p179 = scmp.ne.s32.totalorder %s174, %s176
    %p180 = scmp.eq.s32.totalorder %s18, 0
    %p181 = por %p179, %p180
    %p182 = scmp.ne.s32.totalorder %s174, %s176
    %p183 = scmp.eq.s32.totalorder %s23, 1
    %p184 = por %p182, %p183
    %p185 = scmp.ne.s32.totalorder %s176, %s177
    %p186 = scmp.eq.s32.totalorder %s23, 0
    %p187 = por %p185, %p186
    %p188 = scmp.ne.s32.totalorder %s176, %s177
    %p189 = scmp.eq.s32.totalorder %s24, 1
    %p190 = por %p188, %p189
    %p192 = scmp.ne.s32.totalorder %s177, %s191
    %p193 = scmp.eq.s32.totalorder %s24, 0
    %p194 = por %p192, %p193
    %s196 = sadd.s32 %s195, 1
    %p199 = scmp.eq.s32.totalorder %s18, 1
    %p200 = scmp.ne.s32.totalorder %s195, %s197
    %p201 = scmp.eq.s32.totalorder %s18, 0
    %p202 = por %p200, %p201
    %p203 = scmp.ne.s32.totalorder %s195, %s197
    %p204 = scmp.eq.s32.totalorder %s23, 1
    %p205 = por %p203, %p204
    %p206 = scmp.ne.s32.totalorder %s197, %s198
    %p207 = scmp.eq.s32.totalorder %s23, 0
    %p208 = por %p206, %p207
    %p209 = scmp.ne.s32.totalorder %s197, %s198
    %p210 = scmp.eq.s32.totalorder %s24, 1
    %p211 = por %p209, %p210
    %p213 = scmp.ne.s32.totalorder %s198, %s212
    %p214 = scmp.eq.s32.totalorder %s24, 0
    %p215 = por %p213, %p214
    %s217 = sadd.s32 %s216, 1
    %p220 = scmp.eq.s32.totalorder %s18, 1
    %p221 = scmp.ne.s32.totalorder %s216, %s218
    %p222 = scmp.eq.s32.totalorder %s18, 0
    %p223 = por %p221, %p222
    %p224 = scmp.ne.s32.totalorder %s216, %s218
    %p225 = scmp.eq.s32.totalorder %s23, 1
    %p226 = por %p224, %p225
    %p227 = scmp.ne.s32.totalorder %s218, %s219
    %p228 = scmp.eq.s32.totalorder %s23, 0
    %p229 = por %p227, %p228
    %p230 = scmp.ne.s32.totalorder %s218, %s219
    %p231 = scmp.eq.s32.totalorder %s24, 1
    %p232 = por %p230, %p231
    %p234 = scmp.ne.s32.totalorder %s219, %s233
    %p235 = scmp.eq.s32.totalorder %s24, 0
    %p236 = por %p234, %p235
    %s238 = sadd.s32 %s237, 1
    %p241 = scmp.eq.s32.totalorder %s18, 1
    %p242 = scmp.ne.s32.totalorder %s237, %s239
    %p243 = scmp.eq.s32.totalorder %s18, 0
    %p244 = por %p242, %p243
    %p245 = scmp.ne.s32.totalorder %s237, %s239
    %p246 = scmp.eq.s32.totalorder %s23, 1
    %p247 = por %p245, %p246
    %p248 = scmp.ne.s32.totalorder %s239, %s240
    %p249 = scmp.eq.s32.totalorder %s23, 0
    %p250 = por %p248, %p249
    %p251 = scmp.ne.s32.totalorder %s239, %s240
    %p252 = scmp.eq.s32.totalorder %s24, 1
    %p253 = por %p251, %p252
    %p255 = scmp.ne.s32.totalorder %s240, %s254
    %p256 = scmp.eq.s32.totalorder %s24, 0
    %p257 = por %p255, %p256
    %s259 = sadd.s32 %s258, 1
    %p262 = scmp.eq.s32.totalorder %s18, 1
    %p263 = scmp.ne.s32.totalorder %s258, %s260
    %p264 = scmp.eq.s32.totalorder %s18, 0
    %p265 = por %p263, %p264
    %p266 = scmp.ne.s32.totalorder %s258, %s260
    %p267 = scmp.eq.s32.totalorder %s23, 1
    %p268 = por %p266, %p267
    %p269 = scmp.ne.s32.totalorder %s260, %s261
    %p270 = scmp.eq.s32.totalorder %s23, 0
    %p271 = por %p269, %p270
    %p272 = scmp.ne.s32.totalorder %s260, %s261
    %p273 = scmp.eq.s32.totalorder %s24, 1
    %p274 = por %p272, %p273
    %p276 = scmp.ne.s32.totalorder %s261, %s275
    %p277 = scmp.eq.s32.totalorder %s24, 0
    %p278 = por %p276, %p277
    %s280 = sadd.s32 %s279, 1
    %p283 = scmp.eq.s32.totalorder %s18, 1
    %p284 = scmp.ne.s32.totalorder %s279, %s281
    %p285 = scmp.eq.s32.totalorder %s18, 0
    %p286 = por %p284, %p285
    %p287 = scmp.ne.s32.totalorder %s279, %s281
    %p288 = scmp.eq.s32.totalorder %s23, 1
    %p289 = por %p287, %p288
    %p290 = scmp.ne.s32.totalorder %s281, %s282
    %p291 = scmp.eq.s32.totalorder %s23, 0
    %p292 = por %p290, %p291
    %p293 = scmp.ne.s32.totalorder %s281, %s282
    %p294 = scmp.eq.s32.totalorder %s24, 1
    %p295 = por %p293, %p294
    %p297 = scmp.ne.s32.totalorder %s282, %s296
    %p298 = scmp.eq.s32.totalorder %s24, 0
    %p299 = por %p297, %p298
    %s300 = ssub.s32 %s25, %s37
    %s301 = ssub.s32 %s26, %s33
    %s302 = sor.u32 %s300, %s301
    %p303 = scmp.eq.s32.totalorder %s302, 0
    %s305 = sadd.s32 %s304, 1
    %s306 = scalar_select %p303, %s304, %s305
    %p309 = pneg %p303
    %p310 = scmp.eq.s32.totalorder %s18, 1
    %p311 = por %p309, %p310
    %p312 = scmp.ne.s32.totalorder %s304, %s307
    %p313 = scmp.eq.s32.totalorder %s18, 0
    %p314 = por %p312, %p313
    %p315 = scmp.ne.s32.totalorder %s304, %s307
    %p316 = scmp.eq.s32.totalorder %s23, 1
    %p317 = por %p315, %p316
    %p318 = scmp.ne.s32.totalorder %s307, %s308
    %p319 = scmp.eq.s32.totalorder %s23, 0
    %p320 = por %p318, %p319
    %p321 = scmp.ne.s32.totalorder %s307, %s308
    %p322 = scmp.eq.s32.totalorder %s24, 1
    %p323 = por %p321, %p322
    %p325 = scmp.ne.s32.totalorder %s308, %s324
    %p326 = scmp.eq.s32.totalorder %s24, 0
    %p327 = por %p325, %p326
    %p328 = scmp.le.s32.totalorder 1, %s18
    %p329 = scmp.lt.s32.totalorder %s18, 3
    %p330 = pnand %p328, %p329
    %p331 = pneg %p330
    // Predicated region
    $region9: #{conv_block_upsample_forward.1} parent=5 // pred_check
      _
    $region10: #{conv_block_upsample_forward.1} parent=5 // pred_check_branch
      %333 = sbr.rel (%p330) target = $region12
    $region11: #{conv_block_upsample_forward.1} parent=5 // pred_region
      %s334 = ssub.s32 %s18, 1
      // Predicated region
      $region13: #{conv_block_upsample_forward.1} parent=11 // pred_check
        %p335 = pneg %p103
      $region14: #{conv_block_upsample_forward.1} parent=11 // pred_check_branch
        %337 = sbr.rel (%p335) target = $region16
      $region15: #{conv_block_upsample_forward.1} parent=11 // pred_region
        _
      $region16: #{conv_block_upsample_forward.1} parent=11 // pred_fallthru
        _
      // Predicated region
      $region17: #{conv_block_upsample_forward.1} parent=11 // pred_check
        %p338 = pneg %p124
      $region18: #{conv_block_upsample_forward.1} parent=11 // pred_check_branch
        %340 = sbr.rel (%p338) target = $region20
      $region19: #{conv_block_upsample_forward.1} parent=11 // pred_region
        _
      $region20: #{conv_block_upsample_forward.1} parent=11 // pred_fallthru
        _
      // Predicated region
      $region21: #{conv_block_upsample_forward.1} parent=11 // pred_check
        %p341 = pneg %p145
      $region22: #{conv_block_upsample_forward.1} parent=11 // pred_check_branch
        %343 = sbr.rel (%p341) target = $region24
      $region23: #{conv_block_upsample_forward.1} parent=11 // pred_region
        _
      $region24: #{conv_block_upsample_forward.1} parent=11 // pred_fallthru
        _
      // Predicated region
      $region25: #{conv_block_upsample_forward.1} parent=11 // pred_check
        %p344 = pneg %p166
      $region26: #{conv_block_upsample_forward.1} parent=11 // pred_check_branch
        %346 = sbr.rel (%p344) target = $region28
      $region27: #{conv_block_upsample_forward.1} parent=11 // pred_region
        _
      $region28: #{conv_block_upsample_forward.1} parent=11 // pred_fallthru
        _
      // Predicated region
      $region29: #{conv_block_upsample_forward.1} parent=11 // pred_check
        %p347 = pneg %p187
      $region30: #{conv_block_upsample_forward.1} parent=11 // pred_check_branch
        %349 = sbr.rel (%p347) target = $region32
      $region31: #{conv_block_upsample_forward.1} parent=11 // pred_region
        _
      $region32: #{conv_block_upsample_forward.1} parent=11 // pred_fallthru
        _
      // Predicated region
      $region33: #{conv_block_upsample_forward.1} parent=11 // pred_check
        %p350 = pneg %p208
      $region34: #{conv_block_upsample_forward.1} parent=11 // pred_check_branch
        %352 = sbr.rel (%p350) target = $region36
      $region35: #{conv_block_upsample_forward.1} parent=11 // pred_region
        _
      $region36: #{conv_block_upsample_forward.1} parent=11 // pred_fallthru
        _
      // Predicated region
      $region37: #{conv_block_upsample_forward.1} parent=11 // pred_check
        %p353 = pneg %p229
      $region38: #{conv_block_upsample_forward.1} parent=11 // pred_check_branch
        %355 = sbr.rel (%p353) target = $region40
      $region39: #{conv_block_upsample_forward.1} parent=11 // pred_region
        _
      $region40: #{conv_block_upsample_forward.1} parent=11 // pred_fallthru
        _
      // Predicated region
      $region41: #{conv_block_upsample_forward.1} parent=11 // pred_check
        %p356 = pneg %p250
      $region42: #{conv_block_upsample_forward.1} parent=11 // pred_check_branch
        %358 = sbr.rel (%p356) target = $region44
      $region43: #{conv_block_upsample_forward.1} parent=11 // pred_region
        _
      $region44: #{conv_block_upsample_forward.1} parent=11 // pred_fallthru
        _
      // Predicated region
      $region45: #{conv_block_upsample_forward.1} parent=11 // pred_check
        %p359 = pneg %p271
      $region46: #{conv_block_upsample_forward.1} parent=11 // pred_check_branch
        %361 = sbr.rel (%p359) target = $region48
      $region47: #{conv_block_upsample_forward.1} parent=11 // pred_region
        _
      $region48: #{conv_block_upsample_forward.1} parent=11 // pred_fallthru
        _
      // Predicated region
      $region49: #{conv_block_upsample_forward.1} parent=11 // pred_check
        %p362 = pneg %p292
      $region50: #{conv_block_upsample_forward.1} parent=11 // pred_check_branch
        %364 = sbr.rel (%p362) target = $region52
      $region51: #{conv_block_upsample_forward.1} parent=11 // pred_region
        _
      $region52: #{conv_block_upsample_forward.1} parent=11 // pred_fallthru
        _
    $region12: #{conv_block_upsample_forward.1} parent=5 // pred_fallthru
      _
    %p365 = scmp.lt.s32.totalorder %s18, 2
    // Predicated region
    $region53: #{conv_block_upsample_forward.1} parent=5 // pred_check
      %p366 = pneg %p365
    $region54: #{conv_block_upsample_forward.1} parent=5 // pred_check_branch
      %368 = sbr.rel (%p366) target = $region56
    $region55: #{conv_block_upsample_forward.1} parent=5 // pred_region
      // Predicated region
      $region57: #{conv_block_upsample_forward.1} parent=55 // pred_check
        %p369 = pneg %p50
      $region58: #{conv_block_upsample_forward.1} parent=55 // pred_check_branch
        %371 = sbr.rel (%p369) target = $region60
      $region59: #{conv_block_upsample_forward.1} parent=55 // pred_region
        %p372 = scmp.lt.s32.totalorder %s25, 1
        %s373 = scalar_select %p372, %s25, 1
        %s374 = smul.addr %s373, 8
        %s375 = scalar_lea.vmem %s0, %s374
      $region60: #{conv_block_upsample_forward.1} parent=55 // pred_fallthru
        _
      // Predicated region
      $region61: #{conv_block_upsample_forward.1} parent=55 // pred_check
        %p376 = pneg %p76
      $region62: #{conv_block_upsample_forward.1} parent=55 // pred_check_branch
        %378 = sbr.rel (%p376) target = $region64
      $region63: #{conv_block_upsample_forward.1} parent=55 // pred_region
        %p379 = scmp.lt.s32.totalorder %s25, 1
        %s380 = scalar_select %p379, %s25, 1
        %s381 = smul.addr %s380, 2
        %s382 = smul.addr %s381, 8
        %s383 = scalar_lea.vmem %s1, %s382
      $region64: #{conv_block_upsample_forward.1} parent=55 // pred_fallthru
        _
    $region56: #{conv_block_upsample_forward.1} parent=5 // pred_fallthru
      _
    %p384 = scmp.le.s32.totalorder 1, %s18
    %p385 = scmp.lt.s32.totalorder %s18, 3
    %p386 = pnand %p384, %p385
    %p387 = pneg %p386
    // Predicated region
    $region65: #{conv_block_upsample_forward.1} parent=5 // pred_check
      _
    $region66: #{conv_block_upsample_forward.1} parent=5 // pred_check_branch
      %389 = sbr.rel (%p386) target = $region68
    $region67: #{conv_block_upsample_forward.1} parent=5 // pred_region
      %s390 = ssub.s32 %s18, 1
      %p391 = scmp.lt.s32.totalorder %s27, 1
      %s392 = scalar_select %p391, %s27, 1
      %s393 = smul.addr %s392, 8
      %s394 = scalar_lea.vmem %s0, %s393
      %p395 = pneg %p56
      %p396 = pneg %p53
      %p397 = scmp.lt.s32.totalorder %s27, 1
      %s398 = scalar_select %p397, %s27, 1
      %s399 = smul.addr %s398, 2
      %s400 = smul.addr %s399, 8
      %s401 = scalar_lea.vmem %s1, %s400
      %p402 = pneg %p82
      %p403 = pneg %p79
      %p404 = pneg %p103
      %p405 = pneg %p100
      %p406 = pneg %p124
      %p407 = pneg %p121
      %p408 = pneg %p145
      %p409 = pneg %p142
      %p410 = pneg %p166
      %p411 = pneg %p163
      %p412 = pneg %p187
      %p413 = pneg %p184
      %p414 = pneg %p208
      %p415 = pneg %p205
      %p416 = pneg %p229
      %p417 = pneg %p226
      %p418 = pneg %p250
      %p419 = pneg %p247
      %p420 = pneg %p271
      %p421 = pneg %p268
      %p422 = pneg %p292
      %p423 = pneg %p289
      %p424 = pneg %p320
      %p425 = pneg %p317
      %s426 = smul.u32 2, %s28
      %p427 = scmp.lt.s32.totalorder %s27, 1
      %s428 = scalar_select %p427, %s27, 1
      %p429 = scmp.lt.s32.totalorder %s426, 1
      %s430 = scalar_select %p429, %s426, 1
      %s431 = smul.addr %s428, 2
      %s432 = sadd.s32 %s430, %s431
      %s433 = smul.addr %s432, 8
      %s434 = scalar_lea.vmem %s12, %s433
      %p435 = scmp.lt.s32.totalorder %s27, 1
      %s436 = scalar_select %p435, %s27, 1
      %s437 = smul.addr %s436, 8
      %s438 = scalar_lea.vmem %s0, %s437
      %p439 = scmp.lt.s32.totalorder %s27, 1
      %s440 = scalar_select %p439, %s27, 1
      %s441 = smul.addr %s440, 2
      %s442 = smul.addr %s441, 8
      %s443 = scalar_lea.vmem %s1, %s442
      %s444 = smul.u32 2, %s28
      %p445 = scmp.lt.s32.totalorder %s27, 1
      %s446 = scalar_select %p445, %s27, 1
      %p447 = scmp.lt.s32.totalorder %s444, 1
      %s448 = scalar_select %p447, %s444, 1
      %s449 = smul.addr %s446, 2
      %s450 = sadd.s32 %s448, %s449
      %s451 = smul.addr %s450, 8
      %s452 = scalar_lea.vmem %s12, %s451
      %s453 = smul.u32 2, %s28
      %s454 = smul.u32 %s28, 12
      %s455 = smul.u32 %s28, 6
      %s456 = scalar_lea.vmem %s438, %s455
      %v457 = vld [vmem:[%s456] sm:$0xff]
      %s458 = scalar_lea.vmem %s443, %s454
      %v459 = vld [vmem:[%s458] sm:$0xff]
      %v460 = vld [vmem:[%s458 + $0x8] sm:$0xff]
      %v461 = vld [vmem:[%s4] sm:$0xff]
      %v462 = vld [vmem:[%s4 + $0x8] sm:$0xff]
      %v463 = vld [vmem:[%s4 + $0x10] sm:$0xff]
      %v464 = vld [vmem:[%s4 + $0x18] sm:$0xff]
      %v465 = vld [vmem:[%s4 + $0x20] sm:$0xff]
      %v466 = vld [vmem:[%s4 + $0x28] sm:$0xff]
      %v467 = vld [vmem:[%s4 + $0x30] sm:$0xff]
      %v468 = vld [vmem:[%s4 + $0x38] sm:$0xff]
      %vm469 = vcmask 523264
      %v471 = vsel %vm469, %v457, 0
      %473 = vmatprep.subr.mxu0 0.0
      %474 = vmatpush1.msra.mxu0 %v461
      %475 = vmatprep.subr.mxu0 0.0
      %476 = vmatpush1.msra.mxu0 %v462
      %477 = vmatprep.subr.mxu0 0.0
      %478 = vmatpush1.msra.mxu0 %v463
      %479 = vmatprep.subr.mxu0 0.0
      %480 = vmatpush1.msra.mxu0 %v464
      %481 = vmatprep.subr.mxu0 0.0
      %482 = vmatpush1.msra.mxu0 %v465
      %483 = vmatprep.subr.mxu0 0.0
      %484 = vmatpush1.msra.mxu0 %v466
      %485 = vmatprep.subr.mxu0 0.0
      %486 = vmatpush1.msra.mxu0 %v467
      %487 = vmatprep.subr.mxu0 0.0
      %488 = vmatpush1.msra.mxu0 %v468
      %489 = vmatprep.subr.mxu0 0.0
      %490 = vmatpush1.msra.mxu0 0.0
      %491 = vmatprep.subr.mxu0 0.0
      %492 = vmatpush1.msra.mxu0 0.0
      %493 = vmatprep.subr.mxu0 0.0
      %494 = vmatpush1.msra.mxu0 0.0
      %495 = vmatprep.subr.mxu0 0.0
      %496 = vmatpush1.msra.mxu0 0.0
      %497 = vmatprep.subr.mxu0 0.0
      %498 = vmatpush1.msra.mxu0 0.0
      %499 = vmatprep.subr.mxu0 0.0
      %500 = vmatpush1.msra.mxu0 0.0
      %501 = vmatprep.subr.mxu0 0.0
      %502 = vmatpush1.msra.mxu0 0.0
      %503 = vmatprep.subr.mxu0 0.0
      %504 = vmatpush1.msra.mxu0 0.0
      %505 = vmatprep.subr.mxu0 0.0
      %506 = vmatpush1.msra.mxu0 0.0
      %507 = vmatprep.subr.mxu0 0.0
      %508 = vmatpush1.msra.mxu0 0.0
      %509 = vmatprep.subr.mxu0 0.0
      %510 = vmatpush1.msra.mxu0 0.0
      %511 = vmatprep.subr.mxu0 0.0
      %512 = vmatpush1.msra.mxu0 0.0
      %513 = vmatprep.subr.mxu0 0.0
      %514 = vmatpush1.msra.mxu0 0.0
      %515 = vmatprep.subr.mxu0 0.0
      %516 = vmatpush1.msra.mxu0 0.0
      %517 = vmatprep.subr.mxu0 0.0
      %518 = vmatpush1.msra.mxu0 0.0
      %519 = vmatprep.subr.mxu0 0.0
      %520 = vmatpush1.msra.mxu0 0.0
      %521 = vmatprep.subr.mxu0 0.0
      %522 = vmatpush1.msra.mxu0 0.0
      %523 = vmatprep.subr.mxu0 0.0
      %524 = vmatpush1.msra.mxu0 0.0
      %525 = vmatprep.subr.mxu0 0.0
      %526 = vmatpush1.msra.mxu0 0.0
      %527 = vmatprep.subr.mxu0 0.0
      %528 = vmatpush1.msra.mxu0 0.0
      %529 = vmatprep.subr.mxu0 0.0
      %530 = vmatpush1.msra.mxu0 0.0
      %531 = vmatprep.subr.mxu0 0.0
      %532 = vmatpush1.msra.mxu0 0.0
      %533 = vmatprep.subr.mxu0 0.0
      %534 = vmatpush1.msra.mxu0 0.0
      %535 = vmatprep.subr.mxu0 0.0
      %536 = vmatpush1.msra.mxu0 0.0
      %537 = vmatprep.mubr.f32.mxu0 0.0
      %538 = vmatmul.mubr.f32.gmra.mrb[0].mxu0 %v471
      %v539 = vpop.f32.mrb[0].mxu0
      %v540 = vadd.f32 0.0, %v539
      %v541 = vpop.f32.mrb[0].mxu0
      %542 = vdwg.mxu0
      %v543 = vld [vmem:[%s5] sm:$0xff]
      %v544 = vld [vmem:[%s5 + $0x8] sm:$0xff]
      %v545 = vld [vmem:[%s5 + $0x10] sm:$0xff]
      %v546 = vld [vmem:[%s5 + $0x18] sm:$0xff]
      %v547 = vld [vmem:[%s5 + $0x20] sm:$0xff]
      %v548 = vld [vmem:[%s5 + $0x28] sm:$0xff]
      %v549 = vld [vmem:[%s5 + $0x30] sm:$0xff]
      %v550 = vld [vmem:[%s5 + $0x38] sm:$0xff]
      %551 = vmatprep.subr.mxu0 0.0
      %552 = vmatpush1.msra.mxu0 %v543
      %553 = vmatprep.subr.mxu0 0.0
      %554 = vmatpush1.msra.mxu0 %v544
      %555 = vmatprep.subr.mxu0 0.0
      %556 = vmatpush1.msra.mxu0 %v545
      %557 = vmatprep.subr.mxu0 0.0
      %558 = vmatpush1.msra.mxu0 %v546
      %559 = vmatprep.subr.mxu0 0.0
      %560 = vmatpush1.msra.mxu0 %v547
      %561 = vmatprep.subr.mxu0 0.0
      %562 = vmatpush1.msra.mxu0 %v548
      %563 = vmatprep.subr.mxu0 0.0
      %564 = vmatpush1.msra.mxu0 %v549
      %565 = vmatprep.subr.mxu0 0.0
      %566 = vmatpush1.msra.mxu0 %v550
      %567 = vmatprep.subr.mxu0 0.0
      %568 = vmatpush1.msra.mxu0 0.0
      %569 = vmatprep.subr.mxu0 0.0
      %570 = vmatpush1.msra.mxu0 0.0
      %571 = vmatprep.subr.mxu0 0.0
      %572 = vmatpush1.msra.mxu0 0.0
      %573 = vmatprep.subr.mxu0 0.0
      %574 = vmatpush1.msra.mxu0 0.0
      %575 = vmatprep.subr.mxu0 0.0
      %576 = vmatpush1.msra.mxu0 0.0
      %577 = vmatprep.subr.mxu0 0.0
      %578 = vmatpush1.msra.mxu0 0.0
      %579 = vmatprep.subr.mxu0 0.0
      %580 = vmatpush1.msra.mxu0 0.0
      %581 = vmatprep.subr.mxu0 0.0
      %582 = vmatpush1.msra.mxu0 0.0
      %583 = vmatprep.subr.mxu0 0.0
      %584 = vmatpush1.msra.mxu0 0.0
      %585 = vmatprep.subr.mxu0 0.0
      %586 = vmatpush1.msra.mxu0 0.0
      %587 = vmatprep.subr.mxu0 0.0
      %588 = vmatpush1.msra.mxu0 0.0
      %589 = vmatprep.subr.mxu0 0.0
      %590 = vmatpush1.msra.mxu0 0.0
      %591 = vmatprep.subr.mxu0 0.0
      %592 = vmatpush1.msra.mxu0 0.0
      %593 = vmatprep.subr.mxu0 0.0
      %594 = vmatpush1.msra.mxu0 0.0
      %595 = vmatprep.subr.mxu0 0.0
      %596 = vmatpush1.msra.mxu0 0.0
      %597 = vmatprep.subr.mxu0 0.0
      %598 = vmatpush1.msra.mxu0 0.0
      %599 = vmatprep.subr.mxu0 0.0
      %600 = vmatpush1.msra.mxu0 0.0
      %601 = vmatprep.subr.mxu0 0.0
      %602 = vmatpush1.msra.mxu0 0.0
      %603 = vmatprep.subr.mxu0 0.0
      %604 = vmatpush1.msra.mxu0 0.0
      %605 = vmatprep.subr.mxu0 0.0
      %606 = vmatpush1.msra.mxu0 0.0
      %607 = vmatprep.subr.mxu0 0.0
      %608 = vmatpush1.msra.mxu0 0.0
      %609 = vmatprep.subr.mxu0 0.0
      %610 = vmatpush1.msra.mxu0 0.0
      %611 = vmatprep.subr.mxu0 0.0
      %612 = vmatpush1.msra.mxu0 0.0
      %613 = vmatprep.subr.mxu0 0.0
      %614 = vmatpush1.msra.mxu0 0.0
      %615 = vmatprep.mubr.f32.mxu0 0.0
      %616 = vmatmul.mubr.f32.gmra.mrb[0].mxu0 %v471
      %v617 = vpop.f32.mrb[0].mxu0
      %v618 = vadd.f32 0.0, %v617
      %v619 = vpop.f32.mrb[0].mxu0
      %620 = vdwg.mxu0
      %v621 = vld [vmem:[%s2] sm:$0xff]
      %v622 = vld [vmem:[%s2 + $0x8] sm:$0xff]
      %v623 = vld [vmem:[%s3] sm:$0xff]
      %v624 = vld [vmem:[%s3 + $0x8] sm:$0xff]
      %vm625 = vcmask 64512
      %v627 = vsel %vm625, %v623, 0
      %v630 = vsel %vm625, %v624, 0
      %632 = vmatprep.subr.mxu0 0.0
      %633 = vmatpush1.msra.mxu0 %v618
      %634 = vmatprep.subr.mxu0 0.0
      %635 = vmatpush1.msra.mxu0 0.0
      %636 = vmatprep.subr.mxu0 0.0
      %637 = vmatpush1.msra.mxu0 0.0
      %638 = vmatprep.subr.mxu0 0.0
      %639 = vmatpush1.msra.mxu0 0.0
      %640 = vmatprep.subr.mxu0 0.0
      %641 = vmatpush1.msra.mxu0 0.0
      %642 = vmatprep.subr.mxu0 0.0
      %643 = vmatpush1.msra.mxu0 0.0
      %644 = vmatprep.subr.mxu0 0.0
      %645 = vmatpush1.msra.mxu0 0.0
      %646 = vmatprep.subr.mxu0 0.0
      %647 = vmatpush1.msra.mxu0 0.0
      %648 = vmatprep.subr.mxu0 0.0
      %649 = vmatpush1.msra.mxu0 0.0
      %650 = vmatprep.subr.mxu0 0.0
      %651 = vmatpush1.msra.mxu0 0.0
      %652 = vmatprep.subr.mxu0 0.0
      %653 = vmatpush1.msra.mxu0 0.0
      %654 = vmatprep.subr.mxu0 0.0
      %655 = vmatpush1.msra.mxu0 0.0
      %656 = vmatprep.subr.mxu0 0.0
      %657 = vmatpush1.msra.mxu0 0.0
      %658 = vmatprep.subr.mxu0 0.0
      %659 = vmatpush1.msra.mxu0 0.0
      %660 = vmatprep.subr.mxu0 0.0
      %661 = vmatpush1.msra.mxu0 0.0
      %662 = vmatprep.subr.mxu0 0.0
      %663 = vmatpush1.msra.mxu0 0.0
      %664 = vmatprep.subr.mxu0 0.0
      %665 = vmatpush1.msra.mxu0 0.0
      %666 = vmatprep.subr.mxu0 0.0
      %667 = vmatpush1.msra.mxu0 0.0
      %668 = vmatprep.subr.mxu0 0.0
      %669 = vmatpush1.msra.mxu0 0.0
      %670 = vmatprep.subr.mxu0 0.0
      %671 = vmatpush1.msra.mxu0 0.0
      %672 = vmatprep.subr.mxu0 0.0
      %673 = vmatpush1.msra.mxu0 0.0
      %674 = vmatprep.subr.mxu0 0.0
      %675 = vmatpush1.msra.mxu0 0.0
      %676 = vmatprep.subr.mxu0 0.0
      %677 = vmatpush1.msra.mxu0 0.0
      %678 = vmatprep.subr.mxu0 0.0
      %679 = vmatpush1.msra.mxu0 0.0
      %680 = vmatprep.subr.mxu0 0.0
      %681 = vmatpush1.msra.mxu0 0.0
      %682 = vmatprep.subr.mxu0 0.0
      %683 = vmatpush1.msra.mxu0 0.0
      %684 = vmatprep.subr.mxu0 0.0
      %685 = vmatpush1.msra.mxu0 0.0
      %686 = vmatprep.subr.mxu0 0.0
      %687 = vmatpush1.msra.mxu0 0.0
      %688 = vmatprep.subr.mxu0 0.0
      %689 = vmatpush1.msra.mxu0 0.0
      %690 = vmatprep.subr.mxu0 0.0
      %691 = vmatpush1.msra.mxu0 0.0
      %692 = vmatprep.subr.mxu0 0.0
      %693 = vmatpush1.msra.mxu0 0.0
      %694 = vmatprep.subr.mxu0 0.0
      %695 = vmatpush1.msra.mxu0 0.0
      %696 = vmatprep.mubr.f32.mxu0 0.0
      %697 = vmatmul.mubr.f32.gmra.mrb[0].mxu0 %v627
      %v698 = vpop.f32.mrb[0].mxu0
      %v699 = vadd.f32 0.0, %v698
      %v700 = vpop.f32.mrb[0].mxu0
      %701 = vmatprep.mubr.f32.mxu0 0.0
      %702 = vmatmul.mubr.f32.gmra.mrb[0].mxu0 %v630
      %v703 = vpop.f32.mrb[0].mxu0
      %v704 = vadd.f32 0.0, %v703
      %v705 = vpop.f32.mrb[0].mxu0
      %706 = vdwg.mxu0
      %v708 = vsel %vm625, %v621, 0
      %v711 = vsel %vm625, %v622, 0
      %713 = vmatprep.subr.mxu0 0.0
      %714 = vmatpush1.msra.mxu0 %v540
      %715 = vmatprep.subr.mxu0 0.0
      %716 = vmatpush1.msra.mxu0 0.0
      %717 = vmatprep.subr.mxu0 0.0
      %718 = vmatpush1.msra.mxu0 0.0
      %719 = vmatprep.subr.mxu0 0.0
      %720 = vmatpush1.msra.mxu0 0.0
      %721 = vmatprep.subr.mxu0 0.0
      %722 = vmatpush1.msra.mxu0 0.0
      %723 = vmatprep.subr.mxu0 0.0
      %724 = vmatpush1.msra.mxu0 0.0
      %725 = vmatprep.subr.mxu0 0.0
      %726 = vmatpush1.msra.mxu0 0.0
      %727 = vmatprep.subr.mxu0 0.0
      %728 = vmatpush1.msra.mxu0 0.0
      %729 = vmatprep.subr.mxu0 0.0
      %730 = vmatpush1.msra.mxu0 0.0
      %731 = vmatprep.subr.mxu0 0.0
      %732 = vmatpush1.msra.mxu0 0.0
      %733 = vmatprep.subr.mxu0 0.0
      %734 = vmatpush1.msra.mxu0 0.0
      %735 = vmatprep.subr.mxu0 0.0
      %736 = vmatpush1.msra.mxu0 0.0
      %737 = vmatprep.subr.mxu0 0.0
      %738 = vmatpush1.msra.mxu0 0.0
      %739 = vmatprep.subr.mxu0 0.0
      %740 = vmatpush1.msra.mxu0 0.0
      %741 = vmatprep.subr.mxu0 0.0
      %742 = vmatpush1.msra.mxu0 0.0
      %743 = vmatprep.subr.mxu0 0.0
      %744 = vmatpush1.msra.mxu0 0.0
      %745 = vmatprep.subr.mxu0 0.0
      %746 = vmatpush1.msra.mxu0 0.0
      %747 = vmatprep.subr.mxu0 0.0
      %748 = vmatpush1.msra.mxu0 0.0
      %749 = vmatprep.subr.mxu0 0.0
      %750 = vmatpush1.msra.mxu0 0.0
      %751 = vmatprep.subr.mxu0 0.0
      %752 = vmatpush1.msra.mxu0 0.0
      %753 = vmatprep.subr.mxu0 0.0
      %754 = vmatpush1.msra.mxu0 0.0
      %755 = vmatprep.subr.mxu0 0.0
      %756 = vmatpush1.msra.mxu0 0.0
      %757 = vmatprep.subr.mxu0 0.0
      %758 = vmatpush1.msra.mxu0 0.0
      %759 = vmatprep.subr.mxu0 0.0
      %760 = vmatpush1.msra.mxu0 0.0
      %761 = vmatprep.subr.mxu0 0.0
      %762 = vmatpush1.msra.mxu0 0.0
      %763 = vmatprep.subr.mxu0 0.0
      %764 = vmatpush1.msra.mxu0 0.0
      %765 = vmatprep.subr.mxu0 0.0
      %766 = vmatpush1.msra.mxu0 0.0
      %767 = vmatprep.subr.mxu0 0.0
      %768 = vmatpush1.msra.mxu0 0.0
      %769 = vmatprep.subr.mxu0 0.0
      %770 = vmatpush1.msra.mxu0 0.0
      %771 = vmatprep.subr.mxu0 0.0
      %772 = vmatpush1.msra.mxu0 0.0
      %773 = vmatprep.subr.mxu0 0.0
      %774 = vmatpush1.msra.mxu0 0.0
      %775 = vmatprep.subr.mxu0 0.0
      %776 = vmatpush1.msra.mxu0 0.0
      %777 = vmatprep.mubr.f32.mxu0 0.0
      %778 = vmatmul.mubr.f32.gmra.mrb[0].mxu0 %v708
      %v779 = vpop.f32.mrb[0].mxu0
      %v780 = vadd.f32 %v699, %v779
      %v781 = vpop.f32.mrb[0].mxu0
      %782 = vmatprep.mubr.f32.mxu0 0.0
      %783 = vmatmul.mubr.f32.gmra.mrb[0].mxu0 %v711
      %v784 = vpop.f32.mrb[0].mxu0
      %v785 = vadd.f32 %v704, %v784
      %v786 = vpop.f32.mrb[0].mxu0
      %787 = vdwg.mxu0
      %v788 = vld [vmem:[%s6] sm:$0x1]
      %v790 = vlaneseq
      %v791 = vshrl.u32 %v790, 7
      %v792 = vsub.s32 0, %v791
      %v793 = vrot.slane %v788, %v792
      %v795 = vadd.f32 %v780, %v793
      %v796 = vadd.f32 %v785, %v793
      %v797 = vld [vmem:[%s7] sm:$0xff]
      %v798 = vld [vmem:[%s7 + $0x8] sm:$0xff]
      %v799 = vld [vmem:[%s7 + $0x10] sm:$0xff]
      %v800 = vld [vmem:[%s7 + $0x18] sm:$0xff]
      %v801 = vld [vmem:[%s7 + $0x20] sm:$0xff]
      %v802 = vld [vmem:[%s7 + $0x28] sm:$0xff]
      %v803 = vld [vmem:[%s7 + $0x30] sm:$0xff]
      %v804 = vld [vmem:[%s7 + $0x38] sm:$0xff]
      %v805 = vld [vmem:[%s8] sm:$0xff]
      %v806 = vld [vmem:[%s8 + $0x8] sm:$0xff]
      %v807 = vld [vmem:[%s8 + $0x10] sm:$0xff]
      %v808 = vld [vmem:[%s8 + $0x18] sm:$0xff]
      %v809 = vld [vmem:[%s8 + $0x20] sm:$0xff]
      %v810 = vld [vmem:[%s8 + $0x28] sm:$0xff]
      %v811 = vld [vmem:[%s8 + $0x30] sm:$0xff]
      %v812 = vld [vmem:[%s8 + $0x38] sm:$0xff]
      %v814 = vsel %vm469, %v795, 0
      %v817 = vsel %vm469, %v796, 0
      %819 = vmatprep.subr.mxu0 0.0
      %820 = vmatpush1.msra.mxu0 %v805
      %821 = vmatprep.subr.mxu0 0.0
      %822 = vmatpush1.msra.mxu0 %v806
      %823 = vmatprep.subr.mxu0 0.0
      %824 = vmatpush1.msra.mxu0 %v807
      %825 = vmatprep.subr.mxu0 0.0
      %826 = vmatpush1.msra.mxu0 %v808
      %827 = vmatprep.subr.mxu0 0.0
      %828 = vmatpush1.msra.mxu0 %v809
      %829 = vmatprep.subr.mxu0 0.0
      %830 = vmatpush1.msra.mxu0 %v810
      %831 = vmatprep.subr.mxu0 0.0
      %832 = vmatpush1.msra.mxu0 %v811
      %833 = vmatprep.subr.mxu0 0.0
      %834 = vmatpush1.msra.mxu0 %v812
      %835 = vmatprep.subr.mxu0 0.0
      %836 = vmatpush1.msra.mxu0 0.0
      %837 = vmatprep.subr.mxu0 0.0
      %838 = vmatpush1.msra.mxu0 0.0
      %839 = vmatprep.subr.mxu0 0.0
      %840 = vmatpush1.msra.mxu0 0.0
      %841 = vmatprep.subr.mxu0 0.0
      %842 = vmatpush1.msra.mxu0 0.0
      %843 = vmatprep.subr.mxu0 0.0
      %844 = vmatpush1.msra.mxu0 0.0
      %845 = vmatprep.subr.mxu0 0.0
      %846 = vmatpush1.msra.mxu0 0.0
      %847 = vmatprep.subr.mxu0 0.0
      %848 = vmatpush1.msra.mxu0 0.0
      %849 = vmatprep.subr.mxu0 0.0
      %850 = vmatpush1.msra.mxu0 0.0
      %851 = vmatprep.subr.mxu0 0.0
      %852 = vmatpush1.msra.mxu0 0.0
      %853 = vmatprep.subr.mxu0 0.0
      %854 = vmatpush1.msra.mxu0 0.0
      %855 = vmatprep.subr.mxu0 0.0
      %856 = vmatpush1.msra.mxu0 0.0
      %857 = vmatprep.subr.mxu0 0.0
      %858 = vmatpush1.msra.mxu0 0.0
      %859 = vmatprep.subr.mxu0 0.0
      %860 = vmatpush1.msra.mxu0 0.0
      %861 = vmatprep.subr.mxu0 0.0
      %862 = vmatpush1.msra.mxu0 0.0
      %863 = vmatprep.subr.mxu0 0.0
      %864 = vmatpush1.msra.mxu0 0.0
      %865 = vmatprep.subr.mxu0 0.0
      %866 = vmatpush1.msra.mxu0 0.0
      %867 = vmatprep.subr.mxu0 0.0
      %868 = vmatpush1.msra.mxu0 0.0
      %869 = vmatprep.subr.mxu0 0.0
      %870 = vmatpush1.msra.mxu0 0.0
      %871 = vmatprep.subr.mxu0 0.0
      %872 = vmatpush1.msra.mxu0 0.0
      %873 = vmatprep.subr.mxu0 0.0
      %874 = vmatpush1.msra.mxu0 0.0
      %875 = vmatprep.subr.mxu0 0.0
      %876 = vmatpush1.msra.mxu0 0.0
      %877 = vmatprep.subr.mxu0 0.0
      %878 = vmatpush1.msra.mxu0 0.0
      %879 = vmatprep.subr.mxu0 0.0
      %880 = vmatpush1.msra.mxu0 0.0
      %881 = vmatprep.subr.mxu0 0.0
      %882 = vmatpush1.msra.mxu0 0.0
      %883 = vmatprep.mubr.f32.mxu0 0.0
      %884 = vmatmul.mubr.f32.gmra.mrb[0].mxu0 %v814
      %v885 = vpop.f32.mrb[0].mxu0
      %v886 = vadd.f32 0.0, %v885
      %v887 = vpop.f32.mrb[0].mxu0
      %888 = vmatprep.mubr.f32.mxu0 0.0
      %889 = vmatmul.mubr.f32.gmra.mrb[0].mxu0 %v817
      %v890 = vpop.f32.mrb[0].mxu0
      %v891 = vadd.f32 0.0, %v890
      %v892 = vpop.f32.mrb[0].mxu0
      %893 = vdwg.mxu0
      %v895 = vsel %vm469, %v459, 0
      %v898 = vsel %vm469, %v460, 0
      %900 = vmatprep.subr.mxu0 0.0
      %901 = vmatpush1.msra.mxu0 %v797
      %902 = vmatprep.subr.mxu0 0.0
      %903 = vmatpush1.msra.mxu0 %v798
      %904 = vmatprep.subr.mxu0 0.0
      %905 = vmatpush1.msra.mxu0 %v799
      %906 = vmatprep.subr.mxu0 0.0
      %907 = vmatpush1.msra.mxu0 %v800
      %908 = vmatprep.subr.mxu0 0.0
      %909 = vmatpush1.msra.mxu0 %v801
      %910 = vmatprep.subr.mxu0 0.0
      %911 = vmatpush1.msra.mxu0 %v802
      %912 = vmatprep.subr.mxu0 0.0
      %913 = vmatpush1.msra.mxu0 %v803
      %914 = vmatprep.subr.mxu0 0.0
      %915 = vmatpush1.msra.mxu0 %v804
      %916 = vmatprep.subr.mxu0 0.0
      %917 = vmatpush1.msra.mxu0 0.0
      %918 = vmatprep.subr.mxu0 0.0
      %919 = vmatpush1.msra.mxu0 0.0
      %920 = vmatprep.subr.mxu0 0.0
      %921 = vmatpush1.msra.mxu0 0.0
      %922 = vmatprep.subr.mxu0 0.0
      %923 = vmatpush1.msra.mxu0 0.0
      %924 = vmatprep.subr.mxu0 0.0
      %925 = vmatpush1.msra.mxu0 0.0
      %926 = vmatprep.subr.mxu0 0.0
      %927 = vmatpush1.msra.mxu0 0.0
      %928 = vmatprep.subr.mxu0 0.0
      %929 = vmatpush1.msra.mxu0 0.0
      %930 = vmatprep.subr.mxu0 0.0
      %931 = vmatpush1.msra.mxu0 0.0
      %932 = vmatprep.subr.mxu0 0.0
      %933 = vmatpush1.msra.mxu0 0.0
      %934 = vmatprep.subr.mxu0 0.0
      %935 = vmatpush1.msra.mxu0 0.0
      %936 = vmatprep.subr.mxu0 0.0
      %937 = vmatpush1.msra.mxu0 0.0
      %938 = vmatprep.subr.mxu0 0.0
      %939 = vmatpush1.msra.mxu0 0.0
      %940 = vmatprep.subr.mxu0 0.0
      %941 = vmatpush1.msra.mxu0 0.0
      %942 = vmatprep.subr.mxu0 0.0
      %943 = vmatpush1.msra.mxu0 0.0
      %944 = vmatprep.subr.mxu0 0.0
      %945 = vmatpush1.msra.mxu0 0.0
      %946 = vmatprep.subr.mxu0 0.0
      %947 = vmatpush1.msra.mxu0 0.0
      %948 = vmatprep.subr.mxu0 0.0
      %949 = vmatpush1.msra.mxu0 0.0
      %950 = vmatprep.subr.mxu0 0.0
      %951 = vmatpush1.msra.mxu0 0.0
      %952 = vmatprep.subr.mxu0 0.0
      %953 = vmatpush1.msra.mxu0 0.0
      %954 = vmatprep.subr.mxu0 0.0
      %955 = vmatpush1.msra.mxu0 0.0
      %956 = vmatprep.subr.mxu0 0.0
      %957 = vmatpush1.msra.mxu0 0.0
      %958 = vmatprep.subr.mxu0 0.0
      %959 = vmatpush1.msra.mxu0 0.0
      %960 = vmatprep.subr.mxu0 0.0
      %961 = vmatpush1.msra.mxu0 0.0
      %962 = vmatprep.subr.mxu0 0.0
      %963 = vmatpush1.msra.mxu0 0.0
      %964 = vmatprep.mubr.f32.mxu0 0.0
      %965 = vmatmul.mubr.f32.gmra.mrb[0].mxu0 %v895
      %v966 = vpop.f32.mrb[0].mxu0
      %v967 = vadd.f32 %v886, %v966
      %v968 = vpop.f32.mrb[0].mxu0
      %969 = vmatprep.mubr.f32.mxu0 0.0
      %970 = vmatmul.mubr.f32.gmra.mrb[0].mxu0 %v898
      %v971 = vpop.f32.mrb[0].mxu0
      %v972 = vadd.f32 %v891, %v971
      %v973 = vpop.f32.mrb[0].mxu0
      %974 = vdwg.mxu0
      %s975 = scalar_lea.vmem %s7, 64
      %v976 = vld [vmem:[%s975] sm:$0xff]
      %v977 = vld [vmem:[%s975 + $0x8] sm:$0xff]
      %v978 = vld [vmem:[%s975 + $0x10] sm:$0xff]
      %v979 = vld [vmem:[%s975 + $0x18] sm:$0xff]
      %v980 = vld [vmem:[%s975 + $0x20] sm:$0xff]
      %v981 = vld [vmem:[%s975 + $0x28] sm:$0xff]
      %v982 = vld [vmem:[%s975 + $0x30] sm:$0xff]
      %v983 = vld [vmem:[%s975 + $0x38] sm:$0xff]
      %vm984 = vcmask 1046528
      %v985 = vrot.slane %v459, 1
      %v986 = vrot.slane %v460, 1
      %v987 = vsel %vm984, %v985, %v986
      %v988 = vsel %vm469, %v987, 0
      %v990 = vsel %vm469, %v986, 0
      %992 = vmatprep.subr.mxu0 0.0
      %993 = vmatpush1.msra.mxu0 %v976
      %994 = vmatprep.subr.mxu0 0.0
      %995 = vmatpush1.msra.mxu0 %v977
      %996 = vmatprep.subr.mxu0 0.0
      %997 = vmatpush1.msra.mxu0 %v978
      %998 = vmatprep.subr.mxu0 0.0
      %999 = vmatpush1.msra.mxu0 %v979
      %1000 = vmatprep.subr.mxu0 0.0
      %1001 = vmatpush1.msra.mxu0 %v980
      %1002 = vmatprep.subr.mxu0 0.0
      %1003 = vmatpush1.msra.mxu0 %v981
      %1004 = vmatprep.subr.mxu0 0.0
      %1005 = vmatpush1.msra.mxu0 %v982
      %1006 = vmatprep.subr.mxu0 0.0
      %1007 = vmatpush1.msra.mxu0 %v983
      %1008 = vmatprep.subr.mxu0 0.0
      %1009 = vmatpush1.msra.mxu0 0.0
      %1010 = vmatprep.subr.mxu0 0.0
      %1011 = vmatpush1.msra.mxu0 0.0
      %1012 = vmatprep.subr.mxu0 0.0
      %1013 = vmatpush1.msra.mxu0 0.0
      %1014 = vmatprep.subr.mxu0 0.0
      %1015 = vmatpush1.msra.mxu0 0.0
      %1016 = vmatprep.subr.mxu0 0.0
      %1017 = vmatpush1.msra.mxu0 0.0
      %1018 = vmatprep.subr.mxu0 0.0
      %1019 = vmatpush1.msra.mxu0 0.0
      %1020 = vmatprep.subr.mxu0 0.0
      %1021 = vmatpush1.msra.mxu0 0.0
      %1022 = vmatprep.subr.mxu0 0.0
      %1023 = vmatpush1.msra.mxu0 0.0
      %1024 = vmatprep.subr.mxu0 0.0
      %1025 = vmatpush1.msra.mxu0 0.0
      %1026 = vmatprep.subr.mxu0 0.0
      %1027 = vmatpush1.msra.mxu0 0.0
      %1028 = vmatprep.subr.mxu0 0.0
      %1029 = vmatpush1.msra.mxu0 0.0
      %1030 = vmatprep.subr.mxu0 0.0
      %1031 = vmatpush1.msra.mxu0 0.0
      %1032 = vmatprep.subr.mxu0 0.0
      %1033 = vmatpush1.msra.mxu0 0.0
      %1034 = vmatprep.subr.mxu0 0.0
      %1035 = vmatpush1.msra.mxu0 0.0
      %1036 = vmatprep.subr.mxu0 0.0
      %1037 = vmatpush1.msra.mxu0 0.0
      %1038 = vmatprep.subr.mxu0 0.0
      %1039 = vmatpush1.msra.mxu0 0.0
      %1040 = vmatprep.subr.mxu0 0.0
      %1041 = vmatpush1.msra.mxu0 0.0
      %1042 = vmatprep.subr.mxu0 0.0
      %1043 = vmatpush1.msra.mxu0 0.0
      %1044 = vmatprep.subr.mxu0 0.0
      %1045 = vmatpush1.msra.mxu0 0.0
      %1046 = vmatprep.subr.mxu0 0.0
      %1047 = vmatpush1.msra.mxu0 0.0
      %1048 = vmatprep.subr.mxu0 0.0
      %1049 = vmatpush1.msra.mxu0 0.0
      %1050 = vmatprep.subr.mxu0 0.0
      %1051 = vmatpush1.msra.mxu0 0.0
      %1052 = vmatprep.subr.mxu0 0.0
      %1053 = vmatpush1.msra.mxu0 0.0
      %1054 = vmatprep.subr.mxu0 0.0
      %1055 = vmatpush1.msra.mxu0 0.0
      %1056 = vmatprep.mubr.f32.mxu0 0.0
      %1057 = vmatmul.mubr.f32.gmra.mrb[0].mxu0 %v988
      %v1058 = vpop.f32.mrb[0].mxu0
      %v1059 = vadd.f32 0.0, %v1058
      %v1060 = vpop.f32.mrb[0].mxu0
      %1061 = vmatprep.mubr.f32.mxu0 0.0
      %1062 = vmatmul.mubr.f32.gmra.mrb[0].mxu0 %v990
      %v1063 = vpop.f32.mrb[0].mxu0
      %v1064 = vadd.f32 0.0, %v1063
      %v1065 = vpop.f32.mrb[0].mxu0
      %1066 = vdwg.mxu0
      %v1067 = vadd.f32 %v967, %v1059
      %v1068 = vadd.f32 %v972, %v1064
      %s1069 = scalar_lea.vmem %s8, 64
      %v1070 = vld [vmem:[%s1069] sm:$0xff]
      %v1071 = vld [vmem:[%s1069 + $0x8] sm:$0xff]
      %v1072 = vld [vmem:[%s1069 + $0x10] sm:$0xff]
      %v1073 = vld [vmem:[%s1069 + $0x18] sm:$0xff]
      %v1074 = vld [vmem:[%s1069 + $0x20] sm:$0xff]
      %v1075 = vld [vmem:[%s1069 + $0x28] sm:$0xff]
      %v1076 = vld [vmem:[%s1069 + $0x30] sm:$0xff]
      %v1077 = vld [vmem:[%s1069 + $0x38] sm:$0xff]
      %v1078 = vrot.slane %v795, 1
      %v1079 = vrot.slane %v796, 1
      %v1080 = vsel %vm984, %v1078, %v1079
      %v1081 = vsel %vm469, %v1080, 0
      %v1083 = vsel %vm469, %v1079, 0
      %1085 = vmatprep.subr.mxu0 0.0
      %1086 = vmatpush1.msra.mxu0 %v1070
      %1087 = vmatprep.subr.mxu0 0.0
      %1088 = vmatpush1.msra.mxu0 %v1071
      %1089 = vmatprep.subr.mxu0 0.0
      %1090 = vmatpush1.msra.mxu0 %v1072
      %1091 = vmatprep.subr.mxu0 0.0
      %1092 = vmatpush1.msra.mxu0 %v1073
      %1093 = vmatprep.subr.mxu0 0.0
      %1094 = vmatpush1.msra.mxu0 %v1074
      %1095 = vmatprep.subr.mxu0 0.0
      %1096 = vmatpush1.msra.mxu0 %v1075
      %1097 = vmatprep.subr.mxu0 0.0
      %1098 = vmatpush1.msra.mxu0 %v1076
      %1099 = vmatprep.subr.mxu0 0.0
      %1100 = vmatpush1.msra.mxu0 %v1077
      %1101 = vmatprep.subr.mxu0 0.0
      %1102 = vmatpush1.msra.mxu0 0.0
      %1103 = vmatprep.subr.mxu0 0.0
      %1104 = vmatpush1.msra.mxu0 0.0
      %1105 = vmatprep.subr.mxu0 0.0
      %1106 = vmatpush1.msra.mxu0 0.0
      %1107 = vmatprep.subr.mxu0 0.0
      %1108 = vmatpush1.msra.mxu0 0.0
      %1109 = vmatprep.subr.mxu0 0.0
      %1110 = vmatpush1.msra.mxu0 0.0
      %1111 = vmatprep.subr.mxu0 0.0
      %1112 = vmatpush1.msra.mxu0 0.0
      %1113 = vmatprep.subr.mxu0 0.0
      %1114 = vmatpush1.msra.mxu0 0.0
      %1115 = vmatprep.subr.mxu0 0.0
      %1116 = vmatpush1.msra.mxu0 0.0
      %1117 = vmatprep.subr.mxu0 0.0
      %1118 = vmatpush1.msra.mxu0 0.0
      %1119 = vmatprep.subr.mxu0 0.0
      %1120 = vmatpush1.msra.mxu0 0.0
      %1121 = vmatprep.subr.mxu0 0.0
      %1122 = vmatpush1.msra.mxu0 0.0
      %1123 = vmatprep.subr.mxu0 0.0
      %1124 = vmatpush1.msra.mxu0 0.0
      %1125 = vmatprep.subr.mxu0 0.0
      %1126 = vmatpush1.msra.mxu0 0.0
      %1127 = vmatprep.subr.mxu0 0.0
      %1128 = vmatpush1.msra.mxu0 0.0
      %1129 = vmatprep.subr.mxu0 0.0
      %1130 = vmatpush1.msra.mxu0 0.0
      %1131 = vmatprep.subr.mxu0 0.0
      %1132 = vmatpush1.msra.mxu0 0.0
      %1133 = vmatprep.subr.mxu0 0.0
      %1134 = vmatpush1.msra.mxu0 0.0
      %1135 = vmatprep.subr.mxu0 0.0
      %1136 = vmatpush1.msra.mxu0 0.0
      %1137 = vmatprep.subr.mxu0 0.0
      %1138 = vmatpush1.msra.mxu0 0.0
      %1139 = vmatprep.subr.mxu0 0.0
      %1140 = vmatpush1.msra.mxu0 0.0
      %1141 = vmatprep.subr.mxu0 0.0
      %1142 = vmatpush1.msra.mxu0 0.0
      %1143 = vmatprep.subr.mxu0 0.0
      %1144 = vmatpush1.msra.mxu0 0.0
      %1145 = vmatprep.subr.mxu0 0.0
      %1146 = vmatpush1.msra.mxu0 0.0
      %1147 = vmatprep.subr.mxu0 0.0
      %1148 = vmatpush1.msra.mxu0 0.0
      %1149 = vmatprep.mubr.f32.mxu0 0.0
      %1150 = vmatmul.mubr.f32.gmra.mrb[0].mxu0 %v1081
      %v1151 = vpop.f32.mrb[0].mxu0
      %v1152 = vadd.f32 0.0, %v1151
      %v1153 = vpop.f32.mrb[0].mxu0
      %1154 = vmatprep.mubr.f32.mxu0 0.0
      %1155 = vmatmul.mubr.f32.gmra.mrb[0].mxu0 %v1083
      %v1156 = vpop.f32.mrb[0].mxu0
      %v1157 = vadd.f32 0.0, %v1156
      %v1158 = vpop.f32.mrb[0].mxu0
      %1159 = vdwg.mxu0
      %v1160 = vadd.f32 %v1067, %v1152
      %v1161 = vadd.f32 %v1068, %v1157
      %s1162 = scalar_lea.vmem %s7, 128
      %v1163 = vld [vmem:[%s1162] sm:$0xff]
      %v1164 = vld [vmem:[%s1162 + $0x8] sm:$0xff]
      %v1165 = vld [vmem:[%s1162 + $0x10] sm:$0xff]
      %v1166 = vld [vmem:[%s1162 + $0x18] sm:$0xff]
      %v1167 = vld [vmem:[%s1162 + $0x20] sm:$0xff]
      %v1168 = vld [vmem:[%s1162 + $0x28] sm:$0xff]
      %v1169 = vld [vmem:[%s1162 + $0x30] sm:$0xff]
      %v1170 = vld [vmem:[%s1162 + $0x38] sm:$0xff]
      %vm1171 = vcmask 1045504
      %v1172 = vrot.slane %v459, 2
      %v1173 = vrot.slane %v460, 2
      %v1174 = vsel %vm1171, %v1172, %v1173
      %v1175 = vsel %vm469, %v1174, 0
      %v1177 = vsel %vm469, %v1173, 0
      %1179 = vmatprep.subr.mxu0 0.0
      %1180 = vmatpush1.msra.mxu0 %v1163
      %1181 = vmatprep.subr.mxu0 0.0
      %1182 = vmatpush1.msra.mxu0 %v1164
      %1183 = vmatprep.subr.mxu0 0.0
      %1184 = vmatpush1.msra.mxu0 %v1165
      %1185 = vmatprep.subr.mxu0 0.0
      %1186 = vmatpush1.msra.mxu0 %v1166
      %1187 = vmatprep.subr.mxu0 0.0
      %1188 = vmatpush1.msra.mxu0 %v1167
      %1189 = vmatprep.subr.mxu0 0.0
      %1190 = vmatpush1.msra.mxu0 %v1168
      %1191 = vmatprep.subr.mxu0 0.0
      %1192 = vmatpush1.msra.mxu0 %v1169
      %1193 = vmatprep.subr.mxu0 0.0
      %1194 = vmatpush1.msra.mxu0 %v1170
      %1195 = vmatprep.subr.mxu0 0.0
      %1196 = vmatpush1.msra.mxu0 0.0
      %1197 = vmatprep.subr.mxu0 0.0
      %1198 = vmatpush1.msra.mxu0 0.0
      %1199 = vmatprep.subr.mxu0 0.0
      %1200 = vmatpush1.msra.mxu0 0.0
      %1201 = vmatprep.subr.mxu0 0.0
      %1202 = vmatpush1.msra.mxu0 0.0
      %1203 = vmatprep.subr.mxu0 0.0
      %1204 = vmatpush1.msra.mxu0 0.0
      %1205 = vmatprep.subr.mxu0 0.0
      %1206 = vmatpush1.msra.mxu0 0.0
      %1207 = vmatprep.subr.mxu0 0.0
      %1208 = vmatpush1.msra.mxu0 0.0
      %1209 = vmatprep.subr.mxu0 0.0
      %1210 = vmatpush1.msra.mxu0 0.0
      %1211 = vmatprep.subr.mxu0 0.0
      %1212 = vmatpush1.msra.mxu0 0.0
      %1213 = vmatprep.subr.mxu0 0.0
      %1214 = vmatpush1.msra.mxu0 0.0
      %1215 = vmatprep.subr.mxu0 0.0
      %1216 = vmatpush1.msra.mxu0 0.0
      %1217 = vmatprep.subr.mxu0 0.0
      %1218 = vmatpush1.msra.mxu0 0.0
      %1219 = vmatprep.subr.mxu0 0.0
      %1220 = vmatpush1.msra.mxu0 0.0
      %1221 = vmatprep.subr.mxu0 0.0
      %1222 = vmatpush1.msra.mxu0 0.0
      %1223 = vmatprep.subr.mxu0 0.0
      %1224 = vmatpush1.msra.mxu0 0.0
      %1225 = vmatprep.subr.mxu0 0.0
      %1226 = vmatpush1.msra.mxu0 0.0
      %1227 = vmatprep.subr.mxu0 0.0
      %1228 = vmatpush1.msra.mxu0 0.0
      %1229 = vmatprep.subr.mxu0 0.0
      %1230 = vmatpush1.msra.mxu0 0.0
      %1231 = vmatprep.subr.mxu0 0.0
      %1232 = vmatpush1.msra.mxu0 0.0
      %1233 = vmatprep.subr.mxu0 0.0
      %1234 = vmatpush1.msra.mxu0 0.0
      %1235 = vmatprep.subr.mxu0 0.0
      %1236 = vmatpush1.msra.mxu0 0.0
      %1237 = vmatprep.subr.mxu0 0.0
      %1238 = vmatpush1.msra.mxu0 0.0
      %1239 = vmatprep.subr.mxu0 0.0
      %1240 = vmatpush1.msra.mxu0 0.0
      %1241 = vmatprep.subr.mxu0 0.0
      %1242 = vmatpush1.msra.mxu0 0.0
      %1243 = vmatprep.mubr.f32.mxu0 0.0
      %1244 = vmatmul.mubr.f32.gmra.mrb[0].mxu0 %v1175
      %v1245 = vpop.f32.mrb[0].mxu0
      %v1246 = vadd.f32 0.0, %v1245
      %v1247 = vpop.f32.mrb[0].mxu0
      %1248 = vmatprep.mubr.f32.mxu0 0.0
      %1249 = vmatmul.mubr.f32.gmra.mrb[0].mxu0 %v1177
      %v1250 = vpop.f32.mrb[0].mxu0
      %v1251 = vadd.f32 0.0, %v1250
      %v1252 = vpop.f32.mrb[0].mxu0
      %1253 = vdwg.mxu0
      %v1254 = vadd.f32 %v1160, %v1246
      %v1255 = vadd.f32 %v1161, %v1251
      %s1256 = scalar_lea.vmem %s8, 128
      %v1257 = vld [vmem:[%s1256] sm:$0xff]
      %v1258 = vld [vmem:[%s1256 + $0x8] sm:$0xff]
      %v1259 = vld [vmem:[%s1256 + $0x10] sm:$0xff]
      %v1260 = vld [vmem:[%s1256 + $0x18] sm:$0xff]
      %v1261 = vld [vmem:[%s1256 + $0x20] sm:$0xff]
      %v1262 = vld [vmem:[%s1256 + $0x28] sm:$0xff]
      %v1263 = vld [vmem:[%s1256 + $0x30] sm:$0xff]
      %v1264 = vld [vmem:[%s1256 + $0x38] sm:$0xff]
      %v1265 = vrot.slane %v795, 2
      %v1266 = vrot.slane %v796, 2
      %v1267 = vsel %vm1171, %v1265, %v1266
      %v1268 = vsel %vm469, %v1267, 0
      %v1270 = vsel %vm469, %v1266, 0
      %1272 = vmatprep.subr.mxu0 0.0
      %1273 = vmatpush1.msra.mxu0 %v1257
      %1274 = vmatprep.subr.mxu0 0.0
      %1275 = vmatpush1.msra.mxu0 %v1258
      %1276 = vmatprep.subr.mxu0 0.0
      %1277 = vmatpush1.msra.mxu0 %v1259
      %1278 = vmatprep.subr.mxu0 0.0
      %1279 = vmatpush1.msra.mxu0 %v1260
      %1280 = vmatprep.subr.mxu0 0.0
      %1281 = vmatpush1.msra.mxu0 %v1261
      %1282 = vmatprep.subr.mxu0 0.0
      %1283 = vmatpush1.msra.mxu0 %v1262
      %1284 = vmatprep.subr.mxu0 0.0
      %1285 = vmatpush1.msra.mxu0 %v1263
      %1286 = vmatprep.subr.mxu0 0.0
      %1287 = vmatpush1.msra.mxu0 %v1264
      %1288 = vmatprep.subr.mxu0 0.0
      %1289 = vmatpush1.msra.mxu0 0.0
      %1290 = vmatprep.subr.mxu0 0.0
      %1291 = vmatpush1.msra.mxu0 0.0
      %1292 = vmatprep.subr.mxu0 0.0
      %1293 = vmatpush1.msra.mxu0 0.0
      %1294 = vmatprep.subr.mxu0 0.0
      %1295 = vmatpush1.msra.mxu0 0.0
      %1296 = vmatprep.subr.mxu0 0.0
      %1297 = vmatpush1.msra.mxu0 0.0
      %1298 = vmatprep.subr.mxu0 0.0
      %1299 = vmatpush1.msra.mxu0 0.0
      %1300 = vmatprep.subr.mxu0 0.0
      %1301 = vmatpush1.msra.mxu0 0.0
      %1302 = vmatprep.subr.mxu0 0.0
      %1303 = vmatpush1.msra.mxu0 0.0
      %1304 = vmatprep.subr.mxu0 0.0
      %1305 = vmatpush1.msra.mxu0 0.0
      %1306 = vmatprep.subr.mxu0 0.0
      %1307 = vmatpush1.msra.mxu0 0.0
      %1308 = vmatprep.subr.mxu0 0.0
      %1309 = vmatpush1.msra.mxu0 0.0
      %1310 = vmatprep.subr.mxu0 0.0
      %1311 = vmatpush1.msra.mxu0 0.0
      %1312 = vmatprep.subr.mxu0 0.0
      %1313 = vmatpush1.msra.mxu0 0.0
      %1314 = vmatprep.subr.mxu0 0.0
      %1315 = vmatpush1.msra.mxu0 0.0
      %1316 = vmatprep.subr.mxu0 0.0
      %1317 = vmatpush1.msra.mxu0 0.0
      %1318 = vmatprep.subr.mxu0 0.0
      %1319 = vmatpush1.msra.mxu0 0.0
      %1320 = vmatprep.subr.mxu0 0.0
      %1321 = vmatpush1.msra.mxu0 0.0
      %1322 = vmatprep.subr.mxu0 0.0
      %1323 = vmatpush1.msra.mxu0 0.0
      %1324 = vmatprep.subr.mxu0 0.0
      %1325 = vmatpush1.msra.mxu0 0.0
      %1326 = vmatprep.subr.mxu0 0.0
      %1327 = vmatpush1.msra.mxu0 0.0
      %1328 = vmatprep.subr.mxu0 0.0
      %1329 = vmatpush1.msra.mxu0 0.0
      %1330 = vmatprep.subr.mxu0 0.0
      %1331 = vmatpush1.msra.mxu0 0.0
      %1332 = vmatprep.subr.mxu0 0.0
      %1333 = vmatpush1.msra.mxu0 0.0
      %1334 = vmatprep.subr.mxu0 0.0
      %1335 = vmatpush1.msra.mxu0 0.0
      %1336 = vmatprep.mubr.f32.mxu0 0.0
      %1337 = vmatmul.mubr.f32.gmra.mrb[0].mxu0 %v1268
      %v1338 = vpop.f32.mrb[0].mxu0
      %v1339 = vadd.f32 0.0, %v1338
      %v1340 = vpop.f32.mrb[0].mxu0
      %1341 = vmatprep.mubr.f32.mxu0 0.0
      %1342 = vmatmul.mubr.f32.gmra.mrb[0].mxu0 %v1270
      %v1343 = vpop.f32.mrb[0].mxu0
      %v1344 = vadd.f32 0.0, %v1343
      %v1345 = vpop.f32.mrb[0].mxu0
      %1346 = vdwg.mxu0
      %v1347 = vadd.f32 %v1254, %v1339
      %v1348 = vadd.f32 %v1255, %v1344
      %v1349 = vld [vmem:[%s9] sm:$0x1]
      %v1351 = vlaneseq
      %v1352 = vshrl.u32 %v1351, 7
      %v1353 = vsub.s32 0, %v1352
      %v1354 = vrot.slane %v1349, %v1353
      %v1356 = vadd.f32 %v1347, %v1354
      %v1357 = vadd.f32 %v1348, %v1354
      %v1358 = vmax.f32 %v1356, 0.0
      %v1359 = vmax.f32 %v1357, 0.0
      %v1360 = vld [vmem:[%s10] sm:$0xff]
      %v1361 = vld [vmem:[%s10 + $0x8] sm:$0xff]
      %v1362 = vld [vmem:[%s10 + $0x10] sm:$0xff]
      %v1363 = vld [vmem:[%s10 + $0x18] sm:$0xff]
      %v1364 = vld [vmem:[%s10 + $0x20] sm:$0xff]
      %v1365 = vld [vmem:[%s10 + $0x28] sm:$0xff]
      %v1366 = vld [vmem:[%s10 + $0x30] sm:$0xff]
      %s1367 = scalar_lea.vmem %s10, 56
      %v1368 = vld [vmem:[%s1367] sm:$0xff]
      %v1369 = vld [vmem:[%s1367 + $0x8] sm:$0xff]
      %v1370 = vld [vmem:[%s1367 + $0x10] sm:$0xff]
      %v1371 = vld [vmem:[%s1367 + $0x18] sm:$0xff]
      %v1372 = vld [vmem:[%s1367 + $0x20] sm:$0xff]
      %v1373 = vld [vmem:[%s1367 + $0x28] sm:$0xff]
      %v1374 = vld [vmem:[%s1367 + $0x30] sm:$0xff]
      %v1377 = vrot.slane %v1358, 1
      %v1378 = vrot.slane %v1359, 1
      %v1379 = vsel %vm984, %v1377, %v1378
      %vm1380 = vcmask 457728
      %v1381 = vsel %vm1380, %v1379, 0
      %v1383 = vsel %vm1380, %v1378, 0
      %1385 = vmatprep.subr.mxu0 0.0
      %1386 = vmatpush1.msra.mxu0 %v1368
      %1387 = vmatprep.subr.mxu0 0.0
      %1388 = vmatpush1.msra.mxu0 %v1369
      %1389 = vmatprep.subr.mxu0 0.0
      %1390 = vmatpush1.msra.mxu0 %v1370
      %1391 = vmatprep.subr.mxu0 0.0
      %1392 = vmatpush1.msra.mxu0 %v1371
      %1393 = vmatprep.subr.mxu0 0.0
      %1394 = vmatpush1.msra.mxu0 %v1372
      %1395 = vmatprep.subr.mxu0 0.0
      %1396 = vmatpush1.msra.mxu0 %v1373
      %1397 = vmatprep.subr.mxu0 0.0
      %1398 = vmatpush1.msra.mxu0 %v1374
      %1399 = vmatprep.subr.mxu0 0.0
      %1400 = vmatpush1.msra.mxu0 0.0
      %1401 = vmatprep.subr.mxu0 0.0
      %1402 = vmatpush1.msra.mxu0 0.0
      %1403 = vmatprep.subr.mxu0 0.0
      %1404 = vmatpush1.msra.mxu0 0.0
      %1405 = vmatprep.subr.mxu0 0.0
      %1406 = vmatpush1.msra.mxu0 0.0
      %1407 = vmatprep.subr.mxu0 0.0
      %1408 = vmatpush1.msra.mxu0 0.0
      %1409 = vmatprep.subr.mxu0 0.0
      %1410 = vmatpush1.msra.mxu0 0.0
      %1411 = vmatprep.subr.mxu0 0.0
      %1412 = vmatpush1.msra.mxu0 0.0
      %1413 = vmatprep.subr.mxu0 0.0
      %1414 = vmatpush1.msra.mxu0 0.0
      %1415 = vmatprep.subr.mxu0 0.0
      %1416 = vmatpush1.msra.mxu0 0.0
      %1417 = vmatprep.subr.mxu0 0.0
      %1418 = vmatpush1.msra.mxu0 0.0
      %1419 = vmatprep.subr.mxu0 0.0
      %1420 = vmatpush1.msra.mxu0 0.0
      %1421 = vmatprep.subr.mxu0 0.0
      %1422 = vmatpush1.msra.mxu0 0.0
      %1423 = vmatprep.subr.mxu0 0.0
      %1424 = vmatpush1.msra.mxu0 0.0
      %1425 = vmatprep.subr.mxu0 0.0
      %1426 = vmatpush1.msra.mxu0 0.0
      %1427 = vmatprep.subr.mxu0 0.0
      %1428 = vmatpush1.msra.mxu0 0.0
      %1429 = vmatprep.subr.mxu0 0.0
      %1430 = vmatpush1.msra.mxu0 0.0
      %1431 = vmatprep.subr.mxu0 0.0
      %1432 = vmatpush1.msra.mxu0 0.0
      %1433 = vmatprep.subr.mxu0 0.0
      %1434 = vmatpush1.msra.mxu0 0.0
      %1435 = vmatprep.subr.mxu0 0.0
      %1436 = vmatpush1.msra.mxu0 0.0
      %1437 = vmatprep.subr.mxu0 0.0
      %1438 = vmatpush1.msra.mxu0 0.0
      %1439 = vmatprep.subr.mxu0 0.0
      %1440 = vmatpush1.msra.mxu0 0.0
      %1441 = vmatprep.subr.mxu0 0.0
      %1442 = vmatpush1.msra.mxu0 0.0
      %1443 = vmatprep.subr.mxu0 0.0
      %1444 = vmatpush1.msra.mxu0 0.0
      %1445 = vmatprep.subr.mxu0 0.0
      %1446 = vmatpush1.msra.mxu0 0.0
      %1447 = vmatprep.subr.mxu0 0.0
      %1448 = vmatpush1.msra.mxu0 0.0
      %1449 = vmatprep.mubr.f32.mxu0 0.0
      %1450 = vmatmul.mubr.f32.gmra.mrb[0].mxu0 %v1381
      %v1451 = vpop.f32.mrb[0].mxu0
      %v1452 = vadd.f32 0.0, %v1451
      %v1453 = vpop.f32.mrb[0].mxu0
      %1454 = vmatprep.mubr.f32.mxu0 0.0
      %1455 = vmatmul.mubr.f32.gmra.mrb[0].mxu0 %v1383
      %v1456 = vpop.f32.mrb[0].mxu0
      %v1457 = vadd.f32 0.0, %v1456
      %v1458 = vpop.f32.mrb[0].mxu0
      %1459 = vdwg.mxu0
      %v1460 = vsel %vm1380, %v1358, 0
      %v1462 = vsel %vm1380, %v1359, 0
      %1464 = vmatprep.subr.mxu0 0.0
      %1465 = vmatpush1.msra.mxu0 %v1360
      %1466 = vmatprep.subr.mxu0 0.0
      %1467 = vmatpush1.msra.mxu0 %v1361
      %1468 = vmatprep.subr.mxu0 0.0
      %1469 = vmatpush1.msra.mxu0 %v1362
      %1470 = vmatprep.subr.mxu0 0.0
      %1471 = vmatpush1.msra.mxu0 %v1363
      %1472 = vmatprep.subr.mxu0 0.0
      %1473 = vmatpush1.msra.mxu0 %v1364
      %1474 = vmatprep.subr.mxu0 0.0
      %1475 = vmatpush1.msra.mxu0 %v1365
      %1476 = vmatprep.subr.mxu0 0.0
      %1477 = vmatpush1.msra.mxu0 %v1366
      %1478 = vmatprep.subr.mxu0 0.0
      %1479 = vmatpush1.msra.mxu0 0.0
      %1480 = vmatprep.subr.mxu0 0.0
      %1481 = vmatpush1.msra.mxu0 0.0
      %1482 = vmatprep.subr.mxu0 0.0
      %1483 = vmatpush1.msra.mxu0 0.0
      %1484 = vmatprep.subr.mxu0 0.0
      %1485 = vmatpush1.msra.mxu0 0.0
      %1486 = vmatprep.subr.mxu0 0.0
      %1487 = vmatpush1.msra.mxu0 0.0
      %1488 = vmatprep.subr.mxu0 0.0
      %1489 = vmatpush1.msra.mxu0 0.0
      %1490 = vmatprep.subr.mxu0 0.0
      %1491 = vmatpush1.msra.mxu0 0.0
      %1492 = vmatprep.subr.mxu0 0.0
      %1493 = vmatpush1.msra.mxu0 0.0
      %1494 = vmatprep.subr.mxu0 0.0
      %1495 = vmatpush1.msra.mxu0 0.0
      %1496 = vmatprep.subr.mxu0 0.0
      %1497 = vmatpush1.msra.mxu0 0.0
      %1498 = vmatprep.subr.mxu0 0.0
      %1499 = vmatpush1.msra.mxu0 0.0
      %1500 = vmatprep.subr.mxu0 0.0
      %1501 = vmatpush1.msra.mxu0 0.0
      %1502 = vmatprep.subr.mxu0 0.0
      %1503 = vmatpush1.msra.mxu0 0.0
      %1504 = vmatprep.subr.mxu0 0.0
      %1505 = vmatpush1.msra.mxu0 0.0
      %1506 = vmatprep.subr.mxu0 0.0
      %1507 = vmatpush1.msra.mxu0 0.0
      %1508 = vmatprep.subr.mxu0 0.0
      %1509 = vmatpush1.msra.mxu0 0.0
      %1510 = vmatprep.subr.mxu0 0.0
      %1511 = vmatpush1.msra.mxu0 0.0
      %1512 = vmatprep.subr.mxu0 0.0
      %1513 = vmatpush1.msra.mxu0 0.0
      %1514 = vmatprep.subr.mxu0 0.0
      %1515 = vmatpush1.msra.mxu0 0.0
      %1516 = vmatprep.subr.mxu0 0.0
      %1517 = vmatpush1.msra.mxu0 0.0
      %1518 = vmatprep.subr.mxu0 0.0
      %1519 = vmatpush1.msra.mxu0 0.0
      %1520 = vmatprep.subr.mxu0 0.0
      %1521 = vmatpush1.msra.mxu0 0.0
      %1522 = vmatprep.subr.mxu0 0.0
      %1523 = vmatpush1.msra.mxu0 0.0
      %1524 = vmatprep.subr.mxu0 0.0
      %1525 = vmatpush1.msra.mxu0 0.0
      %1526 = vmatprep.subr.mxu0 0.0
      %1527 = vmatpush1.msra.mxu0 0.0
      %1528 = vmatprep.mubr.f32.mxu0 0.0
      %1529 = vmatmul.mubr.f32.gmra.mrb[0].mxu0 %v1460
      %v1530 = vpop.f32.mrb[0].mxu0
      %v1531 = vadd.f32 %v1452, %v1530
      %v1532 = vpop.f32.mrb[0].mxu0
      %1533 = vmatprep.mubr.f32.mxu0 0.0
      %1534 = vmatmul.mubr.f32.gmra.mrb[0].mxu0 %v1462
      %v1535 = vpop.f32.mrb[0].mxu0
      %v1536 = vadd.f32 %v1457, %v1535
      %v1537 = vpop.f32.mrb[0].mxu0
      %1538 = vdwg.mxu0
      %s1539 = scalar_lea.vmem %s10, 112
      %v1540 = vld [vmem:[%s1539] sm:$0xff]
      %v1541 = vld [vmem:[%s1539 + $0x8] sm:$0xff]
      %v1542 = vld [vmem:[%s1539 + $0x10] sm:$0xff]
      %v1543 = vld [vmem:[%s1539 + $0x18] sm:$0xff]
      %v1544 = vld [vmem:[%s1539 + $0x20] sm:$0xff]
      %v1545 = vld [vmem:[%s1539 + $0x28] sm:$0xff]
      %v1546 = vld [vmem:[%s1539 + $0x30] sm:$0xff]
      %v1547 = vrot.slane %v1358, 2
      %v1548 = vrot.slane %v1359, 2
      %v1549 = vsel %vm1171, %v1547, %v1548
      %v1550 = vsel %vm1380, %v1549, 0
      %v1552 = vsel %vm1380, %v1548, 0
      %1554 = vmatprep.subr.mxu0 0.0
      %1555 = vmatpush1.msra.mxu0 %v1540
      %1556 = vmatprep.subr.mxu0 0.0
      %1557 = vmatpush1.msra.mxu0 %v1541
      %1558 = vmatprep.subr.mxu0 0.0
      %1559 = vmatpush1.msra.mxu0 %v1542
      %1560 = vmatprep.subr.mxu0 0.0
      %1561 = vmatpush1.msra.mxu0 %v1543
      %1562 = vmatprep.subr.mxu0 0.0
      %1563 = vmatpush1.msra.mxu0 %v1544
      %1564 = vmatprep.subr.mxu0 0.0
      %1565 = vmatpush1.msra.mxu0 %v1545
      %1566 = vmatprep.subr.mxu0 0.0
      %1567 = vmatpush1.msra.mxu0 %v1546
      %1568 = vmatprep.subr.mxu0 0.0
      %1569 = vmatpush1.msra.mxu0 0.0
      %1570 = vmatprep.subr.mxu0 0.0
      %1571 = vmatpush1.msra.mxu0 0.0
      %1572 = vmatprep.subr.mxu0 0.0
      %1573 = vmatpush1.msra.mxu0 0.0
      %1574 = vmatprep.subr.mxu0 0.0
      %1575 = vmatpush1.msra.mxu0 0.0
      %1576 = vmatprep.subr.mxu0 0.0
      %1577 = vmatpush1.msra.mxu0 0.0
      %1578 = vmatprep.subr.mxu0 0.0
      %1579 = vmatpush1.msra.mxu0 0.0
      %1580 = vmatprep.subr.mxu0 0.0
      %1581 = vmatpush1.msra.mxu0 0.0
      %1582 = vmatprep.subr.mxu0 0.0
      %1583 = vmatpush1.msra.mxu0 0.0
      %1584 = vmatprep.subr.mxu0 0.0
      %1585 = vmatpush1.msra.mxu0 0.0
      %1586 = vmatprep.subr.mxu0 0.0
      %1587 = vmatpush1.msra.mxu0 0.0
      %1588 = vmatprep.subr.mxu0 0.0
      %1589 = vmatpush1.msra.mxu0 0.0
      %1590 = vmatprep.subr.mxu0 0.0
      %1591 = vmatpush1.msra.mxu0 0.0
      %1592 = vmatprep.subr.mxu0 0.0
      %1593 = vmatpush1.msra.mxu0 0.0
      %1594 = vmatprep.subr.mxu0 0.0
      %1595 = vmatpush1.msra.mxu0 0.0
      %1596 = vmatprep.subr.mxu0 0.0
      %1597 = vmatpush1.msra.mxu0 0.0
      %1598 = vmatprep.subr.mxu0 0.0
      %1599 = vmatpush1.msra.mxu0 0.0
      %1600 = vmatprep.subr.mxu0 0.0
      %1601 = vmatpush1.msra.mxu0 0.0
      %1602 = vmatprep.subr.mxu0 0.0
      %1603 = vmatpush1.msra.mxu0 0.0
      %1604 = vmatprep.subr.mxu0 0.0
      %1605 = vmatpush1.msra.mxu0 0.0
      %1606 = vmatprep.subr.mxu0 0.0
      %1607 = vmatpush1.msra.mxu0 0.0
      %1608 = vmatprep.subr.mxu0 0.0
      %1609 = vmatpush1.msra.mxu0 0.0
      %1610 = vmatprep.subr.mxu0 0.0
      %1611 = vmatpush1.msra.mxu0 0.0
      %1612 = vmatprep.subr.mxu0 0.0
      %1613 = vmatpush1.msra.mxu0 0.0
      %1614 = vmatprep.subr.mxu0 0.0
      %1615 = vmatpush1.msra.mxu0 0.0
      %1616 = vmatprep.subr.mxu0 0.0
      %1617 = vmatpush1.msra.mxu0 0.0
      %1618 = vmatprep.mubr.f32.mxu0 0.0
      %1619 = vmatmul.mubr.f32.gmra.mrb[0].mxu0 %v1550
      %v1620 = vpop.f32.mrb[0].mxu0
      %v1621 = vadd.f32 0.0, %v1620
      %v1622 = vpop.f32.mrb[0].mxu0
      %1623 = vmatprep.mubr.f32.mxu0 0.0
      %1624 = vmatmul.mubr.f32.gmra.mrb[0].mxu0 %v1552
      %v1625 = vpop.f32.mrb[0].mxu0
      %v1626 = vadd.f32 0.0, %v1625
      %v1627 = vpop.f32.mrb[0].mxu0
      %1628 = vdwg.mxu0
      %v1629 = vadd.f32 %v1531, %v1621
      %v1630 = vadd.f32 %v1536, %v1626
      %v1631 = vld [vmem:[%s11] sm:$0x1]
      %v1633 = vlaneseq
      %v1634 = vshrl.u32 %v1633, 7
      %v1635 = vsub.s32 0, %v1634
      %v1636 = vrot.slane %v1631, %v1635
      %v1638 = vadd.f32 %v1629, %v1636
      %v1639 = vadd.f32 %v1630, %v1636
      %v1640 = vmax.f32 %v1638, 0.0
      %v1641 = vmax.f32 %v1639, 0.0
      %vm1642 = vcmask 392192
      %1643 = vst.msk [vmem:[%s452] sm:$0xff] %vm1642, %v1640
      %vm1644 = vcmask 388096
      %1645 = vst.msk [vmem:[%s452 + $0x8] sm:$0xf] %vm1644, %v1641
      %s1646 = smul.u32 2, %s28
      %p1647 = scmp.lt.s32.totalorder %s27, 1
      %s1648 = scalar_select %p1647, %s27, 1
      %p1649 = scmp.lt.s32.totalorder %s1646, 1
      %s1650 = scalar_select %p1649, %s1646, 1
      %s1651 = smul.addr %s1648, 2
      %s1652 = sadd.s32 %s1650, %s1651
      %s1653 = smul.addr %s1652, 8
      %s1654 = scalar_lea.vmem %s12, %s1653
      // Predicated region
      $region69: #{conv_block_upsample_forward.1} parent=67 // pred_check
        %p1655 = pneg %p317
      $region70: #{conv_block_upsample_forward.1} parent=67 // pred_check_branch
        %1657 = sbr.rel (%p1655) target = $region72
      $region71: #{conv_block_upsample_forward.1} parent=67 // pred_region
        %s1658 = smul.u32 2, %s28
      $region72: #{conv_block_upsample_forward.1} parent=67 // pred_fallthru
        _
    $region68: #{conv_block_upsample_forward.1} parent=5 // pred_fallthru
      _
    %p1659 = scmp.le.s32.totalorder 2, %s18
    // Predicated region
    $region73: #{conv_block_upsample_forward.1} parent=5 // pred_check
      %p1660 = pneg %p1659
    $region74: #{conv_block_upsample_forward.1} parent=5 // pred_check_branch
      %1662 = sbr.rel (%p1660) target = $region76
    $region75: #{conv_block_upsample_forward.1} parent=5 // pred_region
      %s1663 = ssub.s32 %s18, 2
      // Predicated region
      $region77: #{conv_block_upsample_forward.1} parent=75 // pred_check
        %p1664 = pneg %p323
      $region78: #{conv_block_upsample_forward.1} parent=75 // pred_check_branch
        %1666 = sbr.rel (%p1664) target = $region80
      $region79: #{conv_block_upsample_forward.1} parent=75 // pred_region
        %s1667 = smul.u32 2, %s30
        %p1668 = scmp.lt.s32.totalorder %s29, 1
        %s1669 = scalar_select %p1668, %s29, 1
        %p1670 = scmp.lt.s32.totalorder %s1667, 1
        %s1671 = scalar_select %p1670, %s1667, 1
        %s1672 = smul.addr %s1669, 2
        %s1673 = sadd.s32 %s1671, %s1672
        %s1674 = smul.addr %s1673, 8
        %s1675 = scalar_lea.vmem %s12, %s1674
      $region80: #{conv_block_upsample_forward.1} parent=75 // pred_fallthru
        _
    $region76: #{conv_block_upsample_forward.1} parent=5 // pred_fallthru
      _
  $region6: #{conv_block_upsample_forward.1} parent=0 // loop_footer
    %s22 = sadd.s32 1, %s18
  $region7: #{conv_block_upsample_forward.1} parent=0 // loop_footer_branch
    %17 = sbr.rel target = $region3
  $region8: #{conv_block_upsample_forward.1} parent=0 // loop_exit
    _

</llo_original>
